<compile_context>
chip_gen: v7x
topology: tpu7x:2x2x1
jax: 0.10.0
libtpu: 0.0.40
codegen_flags: <defaults>
</compile_context>

<pallas_src>
import jax
import jax.numpy as jnp
from jax import lax
from jax.experimental import pallas as pl
from jax.experimental.pallas import tpu as pltpu

HIDDEN = (256, 128, 32, 16)
PAD_OUT = (256, 128, 128, 128)   # lane-padded output widths of fc1..fc4
EPS = 1e-5                       # torch.nn.BatchNorm1d default eps


def _mlp_kernel(x_ref,
                w0, v0, w1, v1, w2, v2, w3, v3,
                wo, bo,
                out_ref):
    h = x_ref[...].astype(jnp.float32)

    def block(h, w_ref, v_ref):
        v = v_ref[...]                      # (3, F): [bias; bn_scale; bn_shift]
        z = jnp.dot(h, w_ref[...], preferred_element_type=jnp.float32) + v[0:1, :]
        z = jnp.maximum(z, 0.0)             # ReLU
        return z * v[1:2, :] + v[2:3, :]    # fused eval-mode BatchNorm1d

    h = block(h, w0, v0)
    h = block(h, w1, v1)                    # dp0: dropout is identity in eval
    h = block(h, w2, v2)                    # dp1: dropout is identity in eval
    h = block(h, w3, v3)

    # Final layer computed transposed: (1, 128) x (tile_b, 128)^T -> (1, tile_b)
    # so the batch dimension sits on the lane axis for an unmasked store.
    logits = lax.dot_general(
        wo[...], h,
        dimension_numbers=(((1,), (1,)), ((), ())),
        preferred_element_type=jnp.float32) + bo[...]
    out_ref[...] = 1.0 / (1.0 + jnp.exp(-logits))   # sigmoid (exact)


def init_params(key, input_size):
    """Deterministic synthetic init (PyTorch-style uniform fan-in for Linear)."""
    dims = (input_size,) + HIDDEN + (1,)
    params = {}
    for i in range(5):
        fan_in, fan_out = dims[i], dims[i + 1]
        key, kw, kb = jax.random.split(key, 3)
        bound = 1.0 / float(fan_in) ** 0.5
        params[f"w{i}"] = jax.random.uniform(kw, (fan_in, fan_out), jnp.float32, -bound, bound)
        params[f"b{i}"] = jax.random.uniform(kb, (fan_out,), jnp.float32, -bound, bound)
    for i, h in enumerate(HIDDEN):
        key, kg, kb, km, kv = jax.random.split(key, 5)
        params[f"gamma{i}"] = jax.random.uniform(kg, (h,), jnp.float32, 0.5, 1.5)
        params[f"beta{i}"] = jax.random.uniform(kb, (h,), jnp.float32, -0.5, 0.5)
        params[f"rmean{i}"] = jax.random.uniform(km, (h,), jnp.float32, -0.5, 0.5)
        params[f"rvar{i}"] = jax.random.uniform(kv, (h,), jnp.float32, 0.5, 1.5)
    return params


def net_forward(x, params, tile_b=256):
    """Forward pass. Batch is tiled by `tile_b` (padded up if needed)."""
    B, D = x.shape
    x = x.astype(jnp.float32)
    n_tiles = -(-B // tile_b)          # cdiv
    Bp = n_tiles * tile_b
    if Bp != B:
        x = jnp.pad(x, ((0, Bp - B), (0, 0)))

    ins = [x]
    in_specs = [pl.BlockSpec((tile_b, D), lambda i: (i, 0))]

    for li in range(4):
        w = params[f"w{li}"]
        scale = params[f"gamma{li}"] / jnp.sqrt(params[f"rvar{li}"] + EPS)
        shift = params[f"beta{li}"] - params[f"rmean{li}"] * scale
        f_out = PAD_OUT[li]
        f_in = w.shape[0] if li == 0 else PAD_OUT[li - 1]
        npad = f_out - w.shape[1]
        # Zero-pad narrow layers to 128 lanes; padded features stay exactly 0
        # through ReLU/BN (bias/shift pad = 0, scale pad = 1, weight pad = 0).
        w = jnp.pad(w, ((0, f_in - w.shape[0]), (0, npad)))
        vec = jnp.stack([
            jnp.pad(params[f"b{li}"], (0, npad)),
            jnp.pad(scale, (0, npad), constant_values=1.0),
            jnp.pad(shift, (0, npad)),
        ])
        ins += [w, vec]
        in_specs += [pl.BlockSpec(w.shape, lambda i: (0, 0)),
                     pl.BlockSpec(vec.shape, lambda i: (0, 0))]

    # Output layer: (16, 1) -> padded (128, 1) -> row (1, 128); bias as (1, 1).
    wo = jnp.pad(params["w4"], ((0, PAD_OUT[-1] - params["w4"].shape[0]), (0, 0))).T
    bo = params["b4"].reshape(1, 1)
    ins += [wo, bo]
    in_specs += [pl.BlockSpec(wo.shape, lambda i: (0, 0)),
                 pl.BlockSpec(bo.shape, lambda i: (0, 0))]

    out_row = pl.pallas_call(
        _mlp_kernel,
        out_shape=jax.ShapeDtypeStruct((1, Bp), jnp.float32),   # lane-dense output
        grid=(n_tiles,),
        in_specs=in_specs,
        out_specs=pl.BlockSpec((1, tile_b), lambda i: (0, i)),
        compiler_params=pltpu.CompilerParams(dimension_semantics=("parallel",)),
    )(*ins)

    return out_row.reshape(Bp, 1)[:B]


def net_forward_ref(x, params):
    """Pure-JAX reference (eval mode) for correctness checking."""
    h = x.astype(jnp.float32)
    for li in range(4):
        h = jnp.maximum(h @ params[f"w{li}"] + params[f"b{li}"], 0.0)
        scale = params[f"gamma{li}"] / jnp.sqrt(params[f"rvar{li}"] + EPS)
        shift = params[f"beta{li}"] - params[f"rmean{li}"] * scale
        h = h * scale + shift
    logits = h @ params["w4"] + params["b4"]
    return jax.nn.sigmoid(logits)


if __name__ == "__main__":
    key = jax.random.PRNGKey(0)
    B, INPUT_SIZE = 512, 32           # 2 grid steps at tile_b=256 (keeps both v7x TCs busy)
    key, kx, kp = jax.random.split(key, 3)
    x = jax.random.normal(kx, (B, INPUT_SIZE), jnp.float32)
    params = init_params(kp, INPUT_SIZE)

    out = jax.block_until_ready(net_forward(x, params))

    ref = net_forward_ref(x, params)
    assert out.shape == (B, 1)
    assert jnp.allclose(out, ref, atol=1e-5, rtol=1e-5), "mismatch vs reference"
    print("KERNEL_OK")
</pallas_src>

<mosaic_0001>
module attributes {stable_mosaic.version = 11 : i64} {
  func.func @_mlp_kernel(%arg0: i32, %arg1: memref<256x32xf32, #tpu.memory_space<vmem>>, %arg2: memref<32x256xf32, #tpu.memory_space<vmem>>, %arg3: memref<3x256xf32, #tpu.memory_space<vmem>>, %arg4: memref<256x128xf32, #tpu.memory_space<vmem>>, %arg5: memref<3x128xf32, #tpu.memory_space<vmem>>, %arg6: memref<128x128xf32, #tpu.memory_space<vmem>>, %arg7: memref<3x128xf32, #tpu.memory_space<vmem>>, %arg8: memref<128x128xf32, #tpu.memory_space<vmem>>, %arg9: memref<3x128xf32, #tpu.memory_space<vmem>>, %arg10: memref<1x128xf32, #tpu.memory_space<vmem>>, %arg11: memref<1x1xf32, #tpu.memory_space<vmem>>, %arg12: memref<1x256xf32, #tpu.memory_space<vmem>>) attributes {dimension_semantics = [#tpu.dimension_semantics<parallel>], iteration_bounds = array<i64: 2>, scalar_prefetch = 0 : i64, scratch_operands = 0 : i64, tpu.core_type = #tpu.core_type<tc>, window_params = [{transform_indices = @transform_0, window_bounds = array<i64: 256, 32>}, {pipeline_mode = #tpu.pipeline_mode<synchronous>, transform_indices = @transform_1, window_bounds = array<i64: 32, 256>}, {pipeline_mode = #tpu.pipeline_mode<synchronous>, transform_indices = @transform_2, window_bounds = array<i64: 3, 256>}, {pipeline_mode = #tpu.pipeline_mode<synchronous>, transform_indices = @transform_3, window_bounds = array<i64: 256, 128>}, {pipeline_mode = #tpu.pipeline_mode<synchronous>, transform_indices = @transform_4, window_bounds = array<i64: 3, 128>}, {pipeline_mode = #tpu.pipeline_mode<synchronous>, transform_indices = @transform_5, window_bounds = array<i64: 128, 128>}, {pipeline_mode = #tpu.pipeline_mode<synchronous>, transform_indices = @transform_6, window_bounds = array<i64: 3, 128>}, {pipeline_mode = #tpu.pipeline_mode<synchronous>, transform_indices = @transform_7, window_bounds = array<i64: 128, 128>}, {pipeline_mode = #tpu.pipeline_mode<synchronous>, transform_indices = @transform_8, window_bounds = array<i64: 3, 128>}, {pipeline_mode = #tpu.pipeline_mode<synchronous>, transform_indices = @transform_9, window_bounds = array<i64: 1, 128>}, {pipeline_mode = #tpu.pipeline_mode<synchronous>, transform_indices = @transform_10, window_bounds = array<i64: 1, 1>}, {transform_indices = @transform_11, window_bounds = array<i64: 1, 256>}]} {
    %c0 = arith.constant 0 : index
    %c0_0 = arith.constant 0 : index
    %0 = vector.load %arg1[%c0, %c0_0] : memref<256x32xf32, #tpu.memory_space<vmem>>, vector<256x32xf32>
    %c0_1 = arith.constant 0 : index
    %c0_2 = arith.constant 0 : index
    %1 = vector.load %arg3[%c0_1, %c0_2] : memref<3x256xf32, #tpu.memory_space<vmem>>, vector<3x256xf32>
    %c0_3 = arith.constant 0 : index
    %c0_4 = arith.constant 0 : index
    %2 = vector.load %arg2[%c0_3, %c0_4] : memref<32x256xf32, #tpu.memory_space<vmem>>, vector<32x256xf32>
    %cst = arith.constant dense<0.000000e+00> : vector<256x256xf32>
    %3 = tpu.matmul %0, %2, %cst {dimension_numbers = #tpu.dot_dimension_numbers<[1], [0], [0], [1], [0, 0, 1, 1], [], []>} : vector<256x32xf32>, vector<32x256xf32>, vector<256x256xf32> -> vector<256x256xf32>
    %4 = vector.extract_strided_slice %1 {offsets = [0, 0], sizes = [1, 256], strides = [1, 1]} : vector<3x256xf32> to vector<1x256xf32>
    %5 = vector.broadcast %4 : vector<1x256xf32> to vector<256x256xf32>
    %6 = arith.addf %3, %5 : vector<256x256xf32>
    %cst_5 = arith.constant 0.000000e+00 : f32
    %7 = vector.broadcast %cst_5 : f32 to vector<256x256xf32>
    %8 = arith.maximumf %6, %7 : vector<256x256xf32>
    %9 = vector.extract_strided_slice %1 {offsets = [1, 0], sizes = [1, 256], strides = [1, 1]} : vector<3x256xf32> to vector<1x256xf32>
    %10 = vector.broadcast %9 : vector<1x256xf32> to vector<256x256xf32>
    %11 = arith.mulf %8, %10 : vector<256x256xf32>
    %12 = vector.extract_strided_slice %1 {offsets = [2, 0], sizes = [1, 256], strides = [1, 1]} : vector<3x256xf32> to vector<1x256xf32>
    %13 = vector.broadcast %12 : vector<1x256xf32> to vector<256x256xf32>
    %14 = arith.addf %11, %13 : vector<256x256xf32>
    %c0_6 = arith.constant 0 : index
    %c0_7 = arith.constant 0 : index
    %15 = vector.load %arg5[%c0_6, %c0_7] : memref<3x128xf32, #tpu.memory_space<vmem>>, vector<3x128xf32>
    %c0_8 = arith.constant 0 : index
    %c0_9 = arith.constant 0 : index
    %16 = vector.load %arg4[%c0_8, %c0_9] : memref<256x128xf32, #tpu.memory_space<vmem>>, vector<256x128xf32>
    %cst_10 = arith.constant dense<0.000000e+00> : vector<256x128xf32>
    %17 = tpu.matmul %14, %16, %cst_10 {dimension_numbers = #tpu.dot_dimension_numbers<[1], [0], [0], [1], [0, 0, 1, 1], [], []>} : vector<256x256xf32>, vector<256x128xf32>, vector<256x128xf32> -> vector<256x128xf32>
    %18 = vector.extract_strided_slice %15 {offsets = [0, 0], sizes = [1, 128], strides = [1, 1]} : vector<3x128xf32> to vector<1x128xf32>
    %19 = vector.broadcast %18 : vector<1x128xf32> to vector<256x128xf32>
    %20 = arith.addf %17, %19 : vector<256x128xf32>
    %cst_11 = arith.constant 0.000000e+00 : f32
    %21 = vector.broadcast %cst_11 : f32 to vector<256x128xf32>
    %22 = arith.maximumf %20, %21 : vector<256x128xf32>
    %23 = vector.extract_strided_slice %15 {offsets = [1, 0], sizes = [1, 128], strides = [1, 1]} : vector<3x128xf32> to vector<1x128xf32>
    %24 = vector.broadcast %23 : vector<1x128xf32> to vector<256x128xf32>
    %25 = arith.mulf %22, %24 : vector<256x128xf32>
    %26 = vector.extract_strided_slice %15 {offsets = [2, 0], sizes = [1, 128], strides = [1, 1]} : vector<3x128xf32> to vector<1x128xf32>
    %27 = vector.broadcast %26 : vector<1x128xf32> to vector<256x128xf32>
    %28 = arith.addf %25, %27 : vector<256x128xf32>
    %c0_12 = arith.constant 0 : index
    %c0_13 = arith.constant 0 : index
    %29 = vector.load %arg7[%c0_12, %c0_13] : memref<3x128xf32, #tpu.memory_space<vmem>>, vector<3x128xf32>
    %c0_14 = arith.constant 0 : index
    %c0_15 = arith.constant 0 : index
    %30 = vector.load %arg6[%c0_14, %c0_15] : memref<128x128xf32, #tpu.memory_space<vmem>>, vector<128x128xf32>
    %cst_16 = arith.constant dense<0.000000e+00> : vector<256x128xf32>
    %31 = tpu.matmul %28, %30, %cst_16 {dimension_numbers = #tpu.dot_dimension_numbers<[1], [0], [0], [1], [0, 0, 1, 1], [], []>} : vector<256x128xf32>, vector<128x128xf32>, vector<256x128xf32> -> vector<256x128xf32>
    %32 = vector.extract_strided_slice %29 {offsets = [0, 0], sizes = [1, 128], strides = [1, 1]} : vector<3x128xf32> to vector<1x128xf32>
    %33 = vector.broadcast %32 : vector<1x128xf32> to vector<256x128xf32>
    %34 = arith.addf %31, %33 : vector<256x128xf32>
    %cst_17 = arith.constant 0.000000e+00 : f32
    %35 = vector.broadcast %cst_17 : f32 to vector<256x128xf32>
    %36 = arith.maximumf %34, %35 : vector<256x128xf32>
    %37 = vector.extract_strided_slice %29 {offsets = [1, 0], sizes = [1, 128], strides = [1, 1]} : vector<3x128xf32> to vector<1x128xf32>
    %38 = vector.broadcast %37 : vector<1x128xf32> to vector<256x128xf32>
    %39 = arith.mulf %36, %38 : vector<256x128xf32>
    %40 = vector.extract_strided_slice %29 {offsets = [2, 0], sizes = [1, 128], strides = [1, 1]} : vector<3x128xf32> to vector<1x128xf32>
    %41 = vector.broadcast %40 : vector<1x128xf32> to vector<256x128xf32>
    %42 = arith.addf %39, %41 : vector<256x128xf32>
    %c0_18 = arith.constant 0 : index
    %c0_19 = arith.constant 0 : index
    %43 = vector.load %arg9[%c0_18, %c0_19] : memref<3x128xf32, #tpu.memory_space<vmem>>, vector<3x128xf32>
    %c0_20 = arith.constant 0 : index
    %c0_21 = arith.constant 0 : index
    %44 = vector.load %arg8[%c0_20, %c0_21] : memref<128x128xf32, #tpu.memory_space<vmem>>, vector<128x128xf32>
    %cst_22 = arith.constant dense<0.000000e+00> : vector<256x128xf32>
    %45 = tpu.matmul %42, %44, %cst_22 {dimension_numbers = #tpu.dot_dimension_numbers<[1], [0], [0], [1], [0, 0, 1, 1], [], []>} : vector<256x128xf32>, vector<128x128xf32>, vector<256x128xf32> -> vector<256x128xf32>
    %46 = vector.extract_strided_slice %43 {offsets = [0, 0], sizes = [1, 128], strides = [1, 1]} : vector<3x128xf32> to vector<1x128xf32>
    %47 = vector.broadcast %46 : vector<1x128xf32> to vector<256x128xf32>
    %48 = arith.addf %45, %47 : vector<256x128xf32>
    %cst_23 = arith.constant 0.000000e+00 : f32
    %49 = vector.broadcast %cst_23 : f32 to vector<256x128xf32>
    %50 = arith.maximumf %48, %49 : vector<256x128xf32>
    %51 = vector.extract_strided_slice %43 {offsets = [1, 0], sizes = [1, 128], strides = [1, 1]} : vector<3x128xf32> to vector<1x128xf32>
    %52 = vector.broadcast %51 : vector<1x128xf32> to vector<256x128xf32>
    %53 = arith.mulf %50, %52 : vector<256x128xf32>
    %54 = vector.extract_strided_slice %43 {offsets = [2, 0], sizes = [1, 128], strides = [1, 1]} : vector<3x128xf32> to vector<1x128xf32>
    %55 = vector.broadcast %54 : vector<1x128xf32> to vector<256x128xf32>
    %56 = arith.addf %53, %55 : vector<256x128xf32>
    %c0_24 = arith.constant 0 : index
    %c0_25 = arith.constant 0 : index
    %57 = vector.load %arg10[%c0_24, %c0_25] : memref<1x128xf32, #tpu.memory_space<vmem>>, vector<1x128xf32>
    %cst_26 = arith.constant dense<0.000000e+00> : vector<1x256xf32>
    %58 = tpu.matmul %57, %56, %cst_26 {dimension_numbers = #tpu.dot_dimension_numbers<[1], [1], [0], [0], [0, 0, 1, 0], [], []>} : vector<1x128xf32>, vector<256x128xf32>, vector<1x256xf32> -> vector<1x256xf32>
    %c0_27 = arith.constant 0 : index
    %c0_28 = arith.constant 0 : index
    %59 = vector.load %arg11[%c0_27, %c0_28] : memref<1x1xf32, #tpu.memory_space<vmem>>, vector<1x1xf32>
    %60 = vector.broadcast %59 : vector<1x1xf32> to vector<1x256xf32>
    %61 = arith.addf %58, %60 : vector<1x256xf32>
    %cst_29 = arith.constant 0.000000e+00 : f32
    %62 = vector.broadcast %cst_29 : f32 to vector<1x256xf32>
    %63 = arith.subf %62, %61 : vector<1x256xf32>
    %64 = math.exp %63 : vector<1x256xf32>
    %cst_30 = arith.constant 1.000000e+00 : f32
    %65 = vector.broadcast %cst_30 : f32 to vector<1x256xf32>
    %66 = arith.addf %65, %64 : vector<1x256xf32>
    %cst_31 = arith.constant 1.000000e+00 : f32
    %67 = vector.broadcast %cst_31 : f32 to vector<1x256xf32>
    %68 = arith.divf %67, %66 : vector<1x256xf32>
    %c0_32 = arith.constant 0 : index
    %c0_33 = arith.constant 0 : index
    %69 = vector.load %arg12[%c0_32, %c0_33] : memref<1x256xf32, #tpu.memory_space<vmem>>, vector<1x256xf32>
    tpu.vector_store %arg12[%c0_32, %c0_33], %68 {strides = array<i32>} : memref<1x256xf32, #tpu.memory_space<vmem>>, vector<1x256xf32>,
    return
  }
  func.func @transform_0(%arg0: i32) -> (i32, i32) {
    %c0_i32 = arith.constant 0 : i32
    %c0_i32_0 = arith.constant 0 : i32
    return %arg0, %c0_i32 : i32, i32
  }
  func.func @transform_1(%arg0: i32) -> (i32, i32) {
    %c0_i32 = arith.constant 0 : i32
    %c0_i32_0 = arith.constant 0 : i32
    %c0_i32_1 = arith.constant 0 : i32
    return %c0_i32, %c0_i32_0 : i32, i32
  }
  func.func @transform_2(%arg0: i32) -> (i32, i32) {
    %c0_i32 = arith.constant 0 : i32
    %c0_i32_0 = arith.constant 0 : i32
    %c0_i32_1 = arith.constant 0 : i32
    return %c0_i32, %c0_i32_0 : i32, i32
  }
  func.func @transform_3(%arg0: i32) -> (i32, i32) {
    %c0_i32 = arith.constant 0 : i32
    %c0_i32_0 = arith.constant 0 : i32
    %c0_i32_1 = arith.constant 0 : i32
    return %c0_i32, %c0_i32_0 : i32, i32
  }
  func.func @transform_4(%arg0: i32) -> (i32, i32) {
    %c0_i32 = arith.constant 0 : i32
    %c0_i32_0 = arith.constant 0 : i32
    %c0_i32_1 = arith.constant 0 : i32
    return %c0_i32, %c0_i32_0 : i32, i32
  }
  func.func @transform_5(%arg0: i32) -> (i32, i32) {
    %c0_i32 = arith.constant 0 : i32
    %c0_i32_0 = arith.constant 0 : i32
    %c0_i32_1 = arith.constant 0 : i32
    return %c0_i32, %c0_i32_0 : i32, i32
  }
  func.func @transform_6(%arg0: i32) -> (i32, i32) {
    %c0_i32 = arith.constant 0 : i32
    %c0_i32_0 = arith.constant 0 : i32
    %c0_i32_1 = arith.constant 0 : i32
    return %c0_i32, %c0_i32_0 : i32, i32
  }
  func.func @transform_7(%arg0: i32) -> (i32, i32) {
    %c0_i32 = arith.constant 0 : i32
    %c0_i32_0 = arith.constant 0 : i32
    %c0_i32_1 = arith.constant 0 : i32
    return %c0_i32, %c0_i32_0 : i32, i32
  }
  func.func @transform_8(%arg0: i32) -> (i32, i32) {
    %c0_i32 = arith.constant 0 : i32
    %c0_i32_0 = arith.constant 0 : i32
    %c0_i32_1 = arith.constant 0 : i32
    return %c0_i32, %c0_i32_0 : i32, i32
  }
  func.func @transform_9(%arg0: i32) -> (i32, i32) {
    %c0_i32 = arith.constant 0 : i32
    %c0_i32_0 = arith.constant 0 : i32
    %c0_i32_1 = arith.constant 0 : i32
    return %c0_i32, %c0_i32_0 : i32, i32
  }
  func.func @transform_10(%arg0: i32) -> (i32, i32) {
    %c0_i32 = arith.constant 0 : i32
    %c0_i32_0 = arith.constant 0 : i32
    %c0_i32_1 = arith.constant 0 : i32
    return %c0_i32, %c0_i32_0 : i32, i32
  }
  func.func @transform_11(%arg0: i32) -> (i32, i32) {
    %c0_i32 = arith.constant 0 : i32
    %c0_i32_0 = arith.constant 0 : i32
    return %c0_i32, %arg0 : i32, i32
  }
}

</mosaic_0001>

<llo_original>
// kernel: tpu_custom_call.1
$region0: #{tpu_custom_call.1}
  #allocation0 [shape = 'u32[]', space=smem, size = 0x4, offset = 0x4, fixed_abs, tag = 'smem constant byte address 0x4 - core index']
  #allocation1 [shape = 'u32[144,128]{1,0:T(1,128)}', space=vmem, size = 0x12000, scoped, tag = 'internal scratch']
  #allocation2 [shape = 'f32[1,1]{1,0:T(1,128)S(1)}', space=vmem, size = 0x200, scoped, tag = 'scoped memory for tpu_custom_call.1']
  %s0 = inlined_call_operand.vmem [shape: f32[512,32], index: 0, kind: input, shape index: {}]
  %s1 = inlined_call_operand.vmem [shape: f32[32,256], index: 1, kind: input, shape index: {}]
  %s2 = inlined_call_operand.vmem [shape: f32[3,256], index: 2, kind: input, shape index: {}]
  %s3 = inlined_call_operand.vmem [shape: f32[256,128], index: 3, kind: input, shape index: {}]
  %s4 = inlined_call_operand.vmem [shape: f32[3,128], index: 4, kind: input, shape index: {}]
  %s5 = inlined_call_operand.vmem [shape: f32[128,128], index: 5, kind: input, shape index: {}]
  %s6 = inlined_call_operand.vmem [shape: f32[3,128], index: 6, kind: input, shape index: {}]
  %s7 = inlined_call_operand.vmem [shape: f32[128,128], index: 7, kind: input, shape index: {}]
  %s8 = inlined_call_operand.vmem [shape: f32[3,128], index: 8, kind: input, shape index: {}]
  %s9 = inlined_call_operand.vmem [shape: f32[1,128], index: 9, kind: input, shape index: {}]
  %s10 = inlined_call_operand.<no memory space> [shape: f32[1,1], index: 10, kind: input, shape index: {}]
  %s11 = inlined_call_operand.hbm [shape: f32[1,512], index: 11, kind: output, shape index: {}]
  %s12 = sld [smem:[#allocation0]]
  $region77: #{tpu_custom_call.1} parent=0
    _
  %s14 = ssub.s32 1, %s12
  %s15 = scalar_select 0, %s14, %s12
  %v16 = vstv %s10
  %17 = vst [vmem:[#allocation2] sm:$0x1] %v16
  $region1: #{tpu_custom_call.1} parent=0
    #allocation3 [shape = 'u8[2048]{0}', space=vmem, size = 0x800, scoped, tag = 'output window, operand 0']
    #allocation4 [shape = 's32[2]{0}', space=sflag, size = 0x8, scoped, tag = 'scoped memory for tpu_custom_call.1']
    %18 = vsyncpa [#allocation4], 0
    %s19 = scalar_lea.sflag [#allocation4], 1
    %20 = vsyncpa %s19, 0
    loop: start=0, step=1, limit=4
    $region2: #{tpu_custom_call.1} parent=1 // loop_pre_header
      _
    $region3: #{tpu_custom_call.1} parent=1 // loop_header
      %s22 = sphi 0, %s26
      %p23 = scmp.ge.s32.totalorder %s22, 4
      %s32 = sphi 0, %s34
      %s35 = sphi 0, %s32
      %s36 = sphi 0, %s35
      %s52 = sphi 0, %s36
      %s56 = sphi 0, %s56
      %s58 = sphi 0, %s56
      %s59 = sphi 0, %s58
      %s73 = sphi 0, %s59
      %s77 = sphi 0, %s77
      %s79 = sphi 0, %s77
      %s80 = sphi 0, %s79
      %s94 = sphi 0, %s80
      %s98 = sphi 0, %s98
      %s100 = sphi 0, %s98
      %s101 = sphi 0, %s100
      %s115 = sphi 0, %s101
      %s119 = sphi 0, %s119
      %s121 = sphi 0, %s119
      %s122 = sphi 0, %s121
      %s136 = sphi 0, %s122
      %s140 = sphi 0, %s140
      %s142 = sphi 0, %s140
      %s143 = sphi 0, %s142
      %s157 = sphi 0, %s143
      %s161 = sphi 0, %s161
      %s163 = sphi 0, %s161
      %s164 = sphi 0, %s163
      %s178 = sphi 0, %s164
      %s182 = sphi 0, %s182
      %s184 = sphi 0, %s182
      %s185 = sphi 0, %s184
      %s199 = sphi 0, %s185
      %s203 = sphi 0, %s203
      %s205 = sphi 0, %s203
      %s206 = sphi 0, %s205
      %s220 = sphi 0, %s206
      %s224 = sphi 0, %s224
      %s226 = sphi 0, %s224
      %s227 = sphi 0, %s226
      %s241 = sphi 0, %s227
      %s245 = sphi 0, %s245
      %s247 = sphi 0, %s245
      %s248 = sphi 0, %s247
      %s262 = sphi 0, %s248
      %s268 = sphi 0, %s270
      %s271 = sphi 0, %s268
      %s272 = sphi 0, %s271
      %s288 = sphi 0, %s272
    $region4: #{tpu_custom_call.1} parent=1 // loop_header_branch
      %25 = sbr.rel (%p23) target = $region8
    $region5: #{tpu_custom_call.1} parent=1 // loop_body
      %s27 = ssub.s32 %s22, 1
      %s28 = ssub.s32 %s22, 2
      %s29 = sadd.s32 %s22, 1
      %s30 = ssub.s32 %s22, %s29
      %p31 = scmp.eq.s32.totalorder %s30, 0
      %s33 = sadd.s32 %s32, 1
      %s34 = scalar_select %p31, %s32, %s33
      %p37 = pneg %p31
      %p38 = scmp.eq.s32.totalorder %s22, 1
      %p39 = por %p37, %p38
      %p40 = scmp.ne.s32.totalorder %s32, %s35
      %p41 = scmp.eq.s32.totalorder %s22, 0
      %p42 = por %p40, %p41
      %p43 = scmp.ne.s32.totalorder %s32, %s35
      %p44 = scmp.eq.s32.totalorder %s27, 1
      %p45 = por %p43, %p44
      %p46 = scmp.ne.s32.totalorder %s35, %s36
      %p47 = scmp.eq.s32.totalorder %s27, 0
      %p48 = por %p46, %p47
      %p49 = scmp.ne.s32.totalorder %s35, %s36
      %p50 = scmp.eq.s32.totalorder %s28, 1
      %p51 = por %p49, %p50
      %p53 = scmp.ne.s32.totalorder %s36, %s52
      %p54 = scmp.eq.s32.totalorder %s28, 0
      %p55 = por %p53, %p54
      %s57 = sadd.s32 %s56, 1
      %p60 = scmp.eq.s32.totalorder %s22, 1
      %p61 = scmp.ne.s32.totalorder %s56, %s58
      %p62 = scmp.eq.s32.totalorder %s22, 0
      %p63 = por %p61, %p62
      %p64 = scmp.ne.s32.totalorder %s56, %s58
      %p65 = scmp.eq.s32.totalorder %s27, 1
      %p66 = por %p64, %p65
      %p67 = scmp.ne.s32.totalorder %s58, %s59
      %p68 = scmp.eq.s32.totalorder %s27, 0
      %p69 = por %p67, %p68
      %p70 = scmp.ne.s32.totalorder %s58, %s59
      %p71 = scmp.eq.s32.totalorder %s28, 1
      %p72 = por %p70, %p71
      %p74 = scmp.ne.s32.totalorder %s59, %s73
      %p75 = scmp.eq.s32.totalorder %s28, 0
      %p76 = por %p74, %p75
      %s78 = sadd.s32 %s77, 1
      %p81 = scmp.eq.s32.totalorder %s22, 1
      %p82 = scmp.ne.s32.totalorder %s77, %s79
      %p83 = scmp.eq.s32.totalorder %s22, 0
      %p84 = por %p82, %p83
      %p85 = scmp.ne.s32.totalorder %s77, %s79
      %p86 = scmp.eq.s32.totalorder %s27, 1
      %p87 = por %p85, %p86
      %p88 = scmp.ne.s32.totalorder %s79, %s80
      %p89 = scmp.eq.s32.totalorder %s27, 0
      %p90 = por %p88, %p89
      %p91 = scmp.ne.s32.totalorder %s79, %s80
      %p92 = scmp.eq.s32.totalorder %s28, 1
      %p93 = por %p91, %p92
      %p95 = scmp.ne.s32.totalorder %s80, %s94
      %p96 = scmp.eq.s32.totalorder %s28, 0
      %p97 = por %p95, %p96
      %s99 = sadd.s32 %s98, 1
      %p102 = scmp.eq.s32.totalorder %s22, 1
      %p103 = scmp.ne.s32.totalorder %s98, %s100
      %p104 = scmp.eq.s32.totalorder %s22, 0
      %p105 = por %p103, %p104
      %p106 = scmp.ne.s32.totalorder %s98, %s100
      %p107 = scmp.eq.s32.totalorder %s27, 1
      %p108 = por %p106, %p107
      %p109 = scmp.ne.s32.totalorder %s100, %s101
      %p110 = scmp.eq.s32.totalorder %s27, 0
      %p111 = por %p109, %p110
      %p112 = scmp.ne.s32.totalorder %s100, %s101
      %p113 = scmp.eq.s32.totalorder %s28, 1
      %p114 = por %p112, %p113
      %p116 = scmp.ne.s32.totalorder %s101, %s115
      %p117 = scmp.eq.s32.totalorder %s28, 0
      %p118 = por %p116, %p117
      %s120 = sadd.s32 %s119, 1
      %p123 = scmp.eq.s32.totalorder %s22, 1
      %p124 = scmp.ne.s32.totalorder %s119, %s121
      %p125 = scmp.eq.s32.totalorder %s22, 0
      %p126 = por %p124, %p125
      %p127 = scmp.ne.s32.totalorder %s119, %s121
      %p128 = scmp.eq.s32.totalorder %s27, 1
      %p129 = por %p127, %p128
      %p130 = scmp.ne.s32.totalorder %s121, %s122
      %p131 = scmp.eq.s32.totalorder %s27, 0
      %p132 = por %p130, %p131
      %p133 = scmp.ne.s32.totalorder %s121, %s122
      %p134 = scmp.eq.s32.totalorder %s28, 1
      %p135 = por %p133, %p134
      %p137 = scmp.ne.s32.totalorder %s122, %s136
      %p138 = scmp.eq.s32.totalorder %s28, 0
      %p139 = por %p137, %p138
      %s141 = sadd.s32 %s140, 1
      %p144 = scmp.eq.s32.totalorder %s22, 1
      %p145 = scmp.ne.s32.totalorder %s140, %s142
      %p146 = scmp.eq.s32.totalorder %s22, 0
      %p147 = por %p145, %p146
      %p148 = scmp.ne.s32.totalorder %s140, %s142
      %p149 = scmp.eq.s32.totalorder %s27, 1
      %p150 = por %p148, %p149
      %p151 = scmp.ne.s32.totalorder %s142, %s143
      %p152 = scmp.eq.s32.totalorder %s27, 0
      %p153 = por %p151, %p152
      %p154 = scmp.ne.s32.totalorder %s142, %s143
      %p155 = scmp.eq.s32.totalorder %s28, 1
      %p156 = por %p154, %p155
      %p158 = scmp.ne.s32.totalorder %s143, %s157
      %p159 = scmp.eq.s32.totalorder %s28, 0
      %p160 = por %p158, %p159
      %s162 = sadd.s32 %s161, 1
      %p165 = scmp.eq.s32.totalorder %s22, 1
      %p166 = scmp.ne.s32.totalorder %s161, %s163
      %p167 = scmp.eq.s32.totalorder %s22, 0
      %p168 = por %p166, %p167
      %p169 = scmp.ne.s32.totalorder %s161, %s163
      %p170 = scmp.eq.s32.totalorder %s27, 1
      %p171 = por %p169, %p170
      %p172 = scmp.ne.s32.totalorder %s163, %s164
      %p173 = scmp.eq.s32.totalorder %s27, 0
      %p174 = por %p172, %p173
      %p175 = scmp.ne.s32.totalorder %s163, %s164
      %p176 = scmp.eq.s32.totalorder %s28, 1
      %p177 = por %p175, %p176
      %p179 = scmp.ne.s32.totalorder %s164, %s178
      %p180 = scmp.eq.s32.totalorder %s28, 0
      %p181 = por %p179, %p180
      %s183 = sadd.s32 %s182, 1
      %p186 = scmp.eq.s32.totalorder %s22, 1
      %p187 = scmp.ne.s32.totalorder %s182, %s184
      %p188 = scmp.eq.s32.totalorder %s22, 0
      %p189 = por %p187, %p188
      %p190 = scmp.ne.s32.totalorder %s182, %s184
      %p191 = scmp.eq.s32.totalorder %s27, 1
      %p192 = por %p190, %p191
      %p193 = scmp.ne.s32.totalorder %s184, %s185
      %p194 = scmp.eq.s32.totalorder %s27, 0
      %p195 = por %p193, %p194
      %p196 = scmp.ne.s32.totalorder %s184, %s185
      %p197 = scmp.eq.s32.totalorder %s28, 1
      %p198 = por %p196, %p197
      %p200 = scmp.ne.s32.totalorder %s185, %s199
      %p201 = scmp.eq.s32.totalorder %s28, 0
      %p202 = por %p200, %p201
      %s204 = sadd.s32 %s203, 1
      %p207 = scmp.eq.s32.totalorder %s22, 1
      %p208 = scmp.ne.s32.totalorder %s203, %s205
      %p209 = scmp.eq.s32.totalorder %s22, 0
      %p210 = por %p208, %p209
      %p211 = scmp.ne.s32.totalorder %s203, %s205
      %p212 = scmp.eq.s32.totalorder %s27, 1
      %p213 = por %p211, %p212
      %p214 = scmp.ne.s32.totalorder %s205, %s206
      %p215 = scmp.eq.s32.totalorder %s27, 0
      %p216 = por %p214, %p215
      %p217 = scmp.ne.s32.totalorder %s205, %s206
      %p218 = scmp.eq.s32.totalorder %s28, 1
      %p219 = por %p217, %p218
      %p221 = scmp.ne.s32.totalorder %s206, %s220
      %p222 = scmp.eq.s32.totalorder %s28, 0
      %p223 = por %p221, %p222
      %s225 = sadd.s32 %s224, 1
      %p228 = scmp.eq.s32.totalorder %s22, 1
      %p229 = scmp.ne.s32.totalorder %s224, %s226
      %p230 = scmp.eq.s32.totalorder %s22, 0
      %p231 = por %p229, %p230
      %p232 = scmp.ne.s32.totalorder %s224, %s226
      %p233 = scmp.eq.s32.totalorder %s27, 1
      %p234 = por %p232, %p233
      %p235 = scmp.ne.s32.totalorder %s226, %s227
      %p236 = scmp.eq.s32.totalorder %s27, 0
      %p237 = por %p235, %p236
      %p238 = scmp.ne.s32.totalorder %s226, %s227
      %p239 = scmp.eq.s32.totalorder %s28, 1
      %p240 = por %p238, %p239
      %p242 = scmp.ne.s32.totalorder %s227, %s241
      %p243 = scmp.eq.s32.totalorder %s28, 0
      %p244 = por %p242, %p243
      %s246 = sadd.s32 %s245, 1
      %p249 = scmp.eq.s32.totalorder %s22, 1
      %p250 = scmp.ne.s32.totalorder %s245, %s247
      %p251 = scmp.eq.s32.totalorder %s22, 0
      %p252 = por %p250, %p251
      %p253 = scmp.ne.s32.totalorder %s245, %s247
      %p254 = scmp.eq.s32.totalorder %s27, 1
      %p255 = por %p253, %p254
      %p256 = scmp.ne.s32.totalorder %s247, %s248
      %p257 = scmp.eq.s32.totalorder %s27, 0
      %p258 = por %p256, %p257
      %p259 = scmp.ne.s32.totalorder %s247, %s248
      %p260 = scmp.eq.s32.totalorder %s28, 1
      %p261 = por %p259, %p260
      %p263 = scmp.ne.s32.totalorder %s248, %s262
      %p264 = scmp.eq.s32.totalorder %s28, 0
      %p265 = por %p263, %p264
      %s266 = ssub.s32 %s22, %s29
      %p267 = scmp.eq.s32.totalorder %s266, 0
      %s269 = sadd.s32 %s268, 1
      %s270 = scalar_select %p267, %s268, %s269
      %p273 = pneg %p267
      %p274 = scmp.eq.s32.totalorder %s22, 1
      %p275 = por %p273, %p274
      %p276 = scmp.ne.s32.totalorder %s268, %s271
      %p277 = scmp.eq.s32.totalorder %s22, 0
      %p278 = por %p276, %p277
      %p279 = scmp.ne.s32.totalorder %s268, %s271
      %p280 = scmp.eq.s32.totalorder %s27, 1
      %p281 = por %p279, %p280
      %p282 = scmp.ne.s32.totalorder %s271, %s272
      %p283 = scmp.eq.s32.totalorder %s27, 0
      %p284 = por %p282, %p283
      %p285 = scmp.ne.s32.totalorder %s271, %s272
      %p286 = scmp.eq.s32.totalorder %s28, 1
      %p287 = por %p285, %p286
      %p289 = scmp.ne.s32.totalorder %s272, %s288
      %p290 = scmp.eq.s32.totalorder %s28, 0
      %p291 = por %p289, %p290
      %p292 = scmp.le.s32.totalorder 1, %s22
      %p293 = scmp.lt.s32.totalorder %s22, 3
      %p294 = pnand %p292, %p293
      %p295 = pneg %p294
      // Predicated region
      $region9: #{tpu_custom_call.1} parent=5 // pred_check
        _
      $region10: #{tpu_custom_call.1} parent=5 // pred_check_branch
        %297 = sbr.rel (%p294) target = $region12
      $region11: #{tpu_custom_call.1} parent=5 // pred_region
        %s298 = ssub.s32 %s22, 1
        // Predicated region
        $region13: #{tpu_custom_call.1} parent=11 // pred_check
          %p299 = pneg %p69
        $region14: #{tpu_custom_call.1} parent=11 // pred_check_branch
          %301 = sbr.rel (%p299) target = $region16
        $region15: #{tpu_custom_call.1} parent=11 // pred_region
          _
        $region16: #{tpu_custom_call.1} parent=11 // pred_fallthru
          _
        // Predicated region
        $region17: #{tpu_custom_call.1} parent=11 // pred_check
          %p302 = pneg %p90
        $region18: #{tpu_custom_call.1} parent=11 // pred_check_branch
          %304 = sbr.rel (%p302) target = $region20
        $region19: #{tpu_custom_call.1} parent=11 // pred_region
          _
        $region20: #{tpu_custom_call.1} parent=11 // pred_fallthru
          _
        // Predicated region
        $region21: #{tpu_custom_call.1} parent=11 // pred_check
          %p305 = pneg %p111
        $region22: #{tpu_custom_call.1} parent=11 // pred_check_branch
          %307 = sbr.rel (%p305) target = $region24
        $region23: #{tpu_custom_call.1} parent=11 // pred_region
          _
        $region24: #{tpu_custom_call.1} parent=11 // pred_fallthru
          _
        // Predicated region
        $region25: #{tpu_custom_call.1} parent=11 // pred_check
          %p308 = pneg %p132
        $region26: #{tpu_custom_call.1} parent=11 // pred_check_branch
          %310 = sbr.rel (%p308) target = $region28
        $region27: #{tpu_custom_call.1} parent=11 // pred_region
          _
        $region28: #{tpu_custom_call.1} parent=11 // pred_fallthru
          _
        // Predicated region
        $region29: #{tpu_custom_call.1} parent=11 // pred_check
          %p311 = pneg %p153
        $region30: #{tpu_custom_call.1} parent=11 // pred_check_branch
          %313 = sbr.rel (%p311) target = $region32
        $region31: #{tpu_custom_call.1} parent=11 // pred_region
          _
        $region32: #{tpu_custom_call.1} parent=11 // pred_fallthru
          _
        // Predicated region
        $region33: #{tpu_custom_call.1} parent=11 // pred_check
          %p314 = pneg %p174
        $region34: #{tpu_custom_call.1} parent=11 // pred_check_branch
          %316 = sbr.rel (%p314) target = $region36
        $region35: #{tpu_custom_call.1} parent=11 // pred_region
          _
        $region36: #{tpu_custom_call.1} parent=11 // pred_fallthru
          _
        // Predicated region
        $region37: #{tpu_custom_call.1} parent=11 // pred_check
          %p317 = pneg %p195
        $region38: #{tpu_custom_call.1} parent=11 // pred_check_branch
          %319 = sbr.rel (%p317) target = $region40
        $region39: #{tpu_custom_call.1} parent=11 // pred_region
          _
        $region40: #{tpu_custom_call.1} parent=11 // pred_fallthru
          _
        // Predicated region
        $region41: #{tpu_custom_call.1} parent=11 // pred_check
          %p320 = pneg %p216
        $region42: #{tpu_custom_call.1} parent=11 // pred_check_branch
          %322 = sbr.rel (%p320) target = $region44
        $region43: #{tpu_custom_call.1} parent=11 // pred_region
          _
        $region44: #{tpu_custom_call.1} parent=11 // pred_fallthru
          _
        // Predicated region
        $region45: #{tpu_custom_call.1} parent=11 // pred_check
          %p323 = pneg %p237
        $region46: #{tpu_custom_call.1} parent=11 // pred_check_branch
          %325 = sbr.rel (%p323) target = $region48
        $region47: #{tpu_custom_call.1} parent=11 // pred_region
          _
        $region48: #{tpu_custom_call.1} parent=11 // pred_fallthru
          _
        // Predicated region
        $region49: #{tpu_custom_call.1} parent=11 // pred_check
          %p326 = pneg %p258
        $region50: #{tpu_custom_call.1} parent=11 // pred_check_branch
          %328 = sbr.rel (%p326) target = $region52
        $region51: #{tpu_custom_call.1} parent=11 // pred_region
          _
        $region52: #{tpu_custom_call.1} parent=11 // pred_fallthru
          _
      $region12: #{tpu_custom_call.1} parent=5 // pred_fallthru
        _
      %p329 = scmp.lt.s32.totalorder %s22, 2
      // Predicated region
      $region53: #{tpu_custom_call.1} parent=5 // pred_check
        %p330 = pneg %p329
      $region54: #{tpu_custom_call.1} parent=5 // pred_check_branch
        %332 = sbr.rel (%p330) target = $region56
      $region55: #{tpu_custom_call.1} parent=5 // pred_region
        // Predicated region
        $region57: #{tpu_custom_call.1} parent=55 // pred_check
          %p333 = pneg %p42
        $region58: #{tpu_custom_call.1} parent=55 // pred_check_branch
          %335 = sbr.rel (%p333) target = $region60
        $region59: #{tpu_custom_call.1} parent=55 // pred_region
          %s336 = smul.u32 32, %s22
          %p337 = scmp.lt.s32.totalorder %s336, 63
          %s338 = scalar_select %p337, %s336, 63
          %s339 = smul.addr %s338, 8
          %s340 = scalar_lea.vmem %s0, %s339
          %s341 = smul.u32 32, %s22
        $region60: #{tpu_custom_call.1} parent=55 // pred_fallthru
          _
      $region56: #{tpu_custom_call.1} parent=5 // pred_fallthru
        _
      %p342 = scmp.le.s32.totalorder 1, %s22
      %p343 = scmp.lt.s32.totalorder %s22, 3
      %p344 = pnand %p342, %p343
      %p345 = pneg %p344
      // Predicated region
      $region61: #{tpu_custom_call.1} parent=5 // pred_check
        _
      $region62: #{tpu_custom_call.1} parent=5 // pred_check_branch
        %347 = sbr.rel (%p344) target = $region64
      $region63: #{tpu_custom_call.1} parent=5 // pred_region
        %s348 = ssub.s32 %s22, 1
        %s349 = smul.u32 32, %s27
        %p350 = scmp.lt.s32.totalorder %s349, 63
        %s351 = scalar_select %p350, %s349, 63
        %s352 = smul.addr %s351, 8
        %s353 = scalar_lea.vmem %s0, %s352
        %p354 = pneg %p48
        %p355 = pneg %p45
        %p356 = pneg %p69
        %p357 = pneg %p66
        %p358 = pneg %p90
        %p359 = pneg %p87
        %p360 = pneg %p111
        %p361 = pneg %p108
        %p362 = pneg %p132
        %p363 = pneg %p129
        %p364 = pneg %p153
        %p365 = pneg %p150
        %p366 = pneg %p174
        %p367 = pneg %p171
        %p368 = pneg %p195
        %p369 = pneg %p192
        %p370 = pneg %p216
        %p371 = pneg %p213
        %p372 = pneg %p237
        %p373 = pneg %p234
        %p374 = pneg %p258
        %p375 = pneg %p255
        %p376 = pneg %p284
        %p377 = pneg %p281
        %s378 = sand.u32 %s271, 1
        %s379 = scalar_lea.sflag [#allocation4], %s378
        %s380 = sand.u32 %s271, 1
        %s381 = smul.addr %s380, 2
        %s382 = scalar_lea.vmem [#allocation3], %s381
        %s383 = smul.u32 32, %s27
        %p384 = scmp.lt.s32.totalorder %s383, 63
        %s385 = scalar_select %p384, %s383, 63
        %s386 = smul.addr %s385, 8
        %s387 = scalar_lea.vmem %s0, %s386
        %s388 = smul.u32 32, %s27
        %s389 = smul.u32 2, %s27
        %v390 = vld [vmem:[%s387] sm:$0xff]
        %v391 = vld [vmem:[%s387 + $0x8] sm:$0xff]
        %v392 = vld [vmem:[%s387 + $0x10] sm:$0xff]
        %v393 = vld [vmem:[%s387 + $0x18] sm:$0xff]
        %v394 = vld [vmem:[%s387 + $0x20] sm:$0xff]
        %v395 = vld [vmem:[%s387 + $0x28] sm:$0xff]
        %v396 = vld [vmem:[%s387 + $0x30] sm:$0xff]
        %v397 = vld [vmem:[%s387 + $0x38] sm:$0xff]
        %v398 = vld [vmem:[%s387 + $0x40] sm:$0xff]
        %v399 = vld [vmem:[%s387 + $0x48] sm:$0xff]
        %v400 = vld [vmem:[%s387 + $0x50] sm:$0xff]
        %v401 = vld [vmem:[%s387 + $0x58] sm:$0xff]
        %v402 = vld [vmem:[%s387 + $0x60] sm:$0xff]
        %v403 = vld [vmem:[%s387 + $0x68] sm:$0xff]
        %v404 = vld [vmem:[%s387 + $0x70] sm:$0xff]
        %v405 = vld [vmem:[%s387 + $0x78] sm:$0xff]
        %v406 = vld [vmem:[%s387 + $0x80] sm:$0xff]
        %v407 = vld [vmem:[%s387 + $0x88] sm:$0xff]
        %v408 = vld [vmem:[%s387 + $0x90] sm:$0xff]
        %v409 = vld [vmem:[%s387 + $0x98] sm:$0xff]
        %v410 = vld [vmem:[%s387 + $0xa0] sm:$0xff]
        %v411 = vld [vmem:[%s387 + $0xa8] sm:$0xff]
        %v412 = vld [vmem:[%s387 + $0xb0] sm:$0xff]
        %v413 = vld [vmem:[%s387 + $0xb8] sm:$0xff]
        %v414 = vld [vmem:[%s387 + $0xc0] sm:$0xff]
        %v415 = vld [vmem:[%s387 + $0xc8] sm:$0xff]
        %v416 = vld [vmem:[%s387 + $0xd0] sm:$0xff]
        %v417 = vld [vmem:[%s387 + $0xd8] sm:$0xff]
        %v418 = vld [vmem:[%s387 + $0xe0] sm:$0xff]
        %v419 = vld [vmem:[%s387 + $0xe8] sm:$0xff]
        %v420 = vld [vmem:[%s387 + $0xf0] sm:$0xff]
        %v421 = vld [vmem:[%s387 + $0xf8] sm:$0xff]
        %v422 = vld [vmem:[%s2] sm:$0x77]
        %v423 = vld [vmem:[%s1] sm:$0xff]
        %v424 = vld [vmem:[%s1 + $0x8] sm:$0xff]
        %v425 = vld [vmem:[%s1 + $0x10] sm:$0xff]
        %v426 = vld [vmem:[%s1 + $0x18] sm:$0xff]
        %v427 = vld [vmem:[%s1 + $0x20] sm:$0xff]
        %v428 = vld [vmem:[%s1 + $0x28] sm:$0xff]
        %v429 = vld [vmem:[%s1 + $0x30] sm:$0xff]
        %v430 = vld [vmem:[%s1 + $0x38] sm:$0xff]
        %v432 = vlaneseq
        %v433 = vshrl.u32 %v432, 7
        %v434 = vsub.s32 0, %v433
        %v435 = vrot.slane %v422, %v434
        %v436 = vlaneseq
        %v437 = vshrl.u32 %v436, 7
        %v438 = vsub.s32 4, %v437
        %v439 = vrot.slane %v422, %v438
        %v442 = vlaneseq
        %v443 = vshrl.u32 %v442, 7
        %v444 = vsub.s32 0, %v443
        %v445 = vrot.slane %v435, %v444
        %v446 = vlaneseq
        %v447 = vshrl.u32 %v446, 7
        %v448 = vsub.s32 0, %v447
        %v449 = vrot.slane %v439, %v448
        %vm450 = vcmask 261120
        %v452 = vsel %vm450, %v390, 0
        %v455 = vsel %vm450, %v391, 0
        %v458 = vsel %vm450, %v392, 0
        %v461 = vsel %vm450, %v393, 0
        %v464 = vsel %vm450, %v394, 0
        %v467 = vsel %vm450, %v395, 0
        %v470 = vsel %vm450, %v396, 0
        %v473 = vsel %vm450, %v397, 0
        %v476 = vsel %vm450, %v398, 0
        %v479 = vsel %vm450, %v399, 0
        %v482 = vsel %vm450, %v400, 0
        %v485 = vsel %vm450, %v401, 0
        %v488 = vsel %vm450, %v402, 0
        %v491 = vsel %vm450, %v403, 0
        %v494 = vsel %vm450, %v404, 0
        %v497 = vsel %vm450, %v405, 0
        %v500 = vsel %vm450, %v406, 0
        %v503 = vsel %vm450, %v407, 0
        %v506 = vsel %vm450, %v408, 0
        %v509 = vsel %vm450, %v409, 0
        %v512 = vsel %vm450, %v410, 0
        %v515 = vsel %vm450, %v411, 0
        %v518 = vsel %vm450, %v412, 0
        %v521 = vsel %vm450, %v413, 0
        %v524 = vsel %vm450, %v414, 0
        %v527 = vsel %vm450, %v415, 0
        %v530 = vsel %vm450, %v416, 0
        %v533 = vsel %vm450, %v417, 0
        %v536 = vsel %vm450, %v418, 0
        %v539 = vsel %vm450, %v419, 0
        %v542 = vsel %vm450, %v420, 0
        %v545 = vsel %vm450, %v421, 0
        %547 = vmatprep.subr.mxu0 %v424
        %548 = vmatpush1.msra.mxu0 %v423
        %549 = vmatprep.subr.mxu0 %v426
        %550 = vmatpush1.msra.mxu0 %v425
        %551 = vmatprep.subr.mxu0 %v428
        %552 = vmatpush1.msra.mxu0 %v427
        %553 = vmatprep.subr.mxu0 %v430
        %554 = vmatpush1.msra.mxu0 %v429
        %555 = vmatprep.subr.mxu0 0.0
        %556 = vmatpush1.msra.mxu0 0.0
        %557 = vmatprep.subr.mxu0 0.0
        %558 = vmatpush1.msra.mxu0 0.0
        %559 = vmatprep.subr.mxu0 0.0
        %560 = vmatpush1.msra.mxu0 0.0
        %561 = vmatprep.subr.mxu0 0.0
        %562 = vmatpush1.msra.mxu0 0.0
        %563 = vmatprep.subr.mxu0 0.0
        %564 = vmatpush1.msra.mxu0 0.0
        %565 = vmatprep.subr.mxu0 0.0
        %566 = vmatpush1.msra.mxu0 0.0
        %567 = vmatprep.subr.mxu0 0.0
        %568 = vmatpush1.msra.mxu0 0.0
        %569 = vmatprep.subr.mxu0 0.0
        %570 = vmatpush1.msra.mxu0 0.0
        %571 = vmatprep.subr.mxu0 0.0
        %572 = vmatpush1.msra.mxu0 0.0
        %573 = vmatprep.subr.mxu0 0.0
        %574 = vmatpush1.msra.mxu0 0.0
        %575 = vmatprep.subr.mxu0 0.0
        %576 = vmatpush1.msra.mxu0 0.0
        %577 = vmatprep.subr.mxu0 0.0
        %578 = vmatpush1.msra.mxu0 0.0
        %579 = vmatprep.subr.mxu0 0.0
        %580 = vmatpush1.msra.mxu0 0.0
        %581 = vmatprep.subr.mxu0 0.0
        %582 = vmatpush1.msra.mxu0 0.0
        %583 = vmatprep.subr.mxu0 0.0
        %584 = vmatpush1.msra.mxu0 0.0
        %585 = vmatprep.subr.mxu0 0.0
        %586 = vmatpush1.msra.mxu0 0.0
        %587 = vmatprep.subr.mxu0 0.0
        %588 = vmatpush1.msra.mxu0 0.0
        %589 = vmatprep.subr.mxu0 0.0
        %590 = vmatpush1.msra.mxu0 0.0
        %591 = vmatprep.subr.mxu0 0.0
        %592 = vmatpush1.msra.mxu0 0.0
        %593 = vmatprep.subr.mxu0 0.0
        %594 = vmatpush1.msra.mxu0 0.0
        %595 = vmatprep.subr.mxu0 0.0
        %596 = vmatpush1.msra.mxu0 0.0
        %597 = vmatprep.subr.mxu0 0.0
        %598 = vmatpush1.msra.mxu0 0.0
        %599 = vmatprep.subr.mxu0 0.0
        %600 = vmatpush1.msra.mxu0 0.0
        %601 = vmatprep.subr.mxu0 0.0
        %602 = vmatpush1.msra.mxu0 0.0
        %603 = vmatprep.subr.mxu0 0.0
        %604 = vmatpush1.msra.mxu0 0.0
        %605 = vmatprep.subr.mxu0 0.0
        %606 = vmatpush1.msra.mxu0 0.0
        %607 = vmatprep.subr.mxu0 0.0
        %608 = vmatpush1.msra.mxu0 0.0
        %609 = vmatprep.subr.mxu0 0.0
        %610 = vmatpush1.msra.mxu0 0.0
        %611 = vmatprep.mubr.f32.mxu0 0.0
        %612 = vmatmul.mubr.f32.gmra.mrb[0].mxu0 %v452
        %v613 = vpop.f32.mrb[0].mxu0
        %v614 = vadd.f32 %v445, %v613
        %v615 = vpop.f32.mrb[0].mxu0
        %v616 = vadd.f32 %v449, %v615
        %617 = vmatprep.mubr.f32.mxu0 0.0
        %618 = vmatmul.mubr.f32.gmra.mrb[0].mxu0 %v455
        %v619 = vpop.f32.mrb[0].mxu0
        %v620 = vadd.f32 %v445, %v619
        %v621 = vpop.f32.mrb[0].mxu0
        %v622 = vadd.f32 %v449, %v621
        %623 = vmatprep.mubr.f32.mxu0 0.0
        %624 = vmatmul.mubr.f32.gmra.mrb[0].mxu0 %v458
        %v625 = vpop.f32.mrb[0].mxu0
        %v626 = vadd.f32 %v445, %v625
        %v627 = vpop.f32.mrb[0].mxu0
        %v628 = vadd.f32 %v449, %v627
        %629 = vmatprep.mubr.f32.mxu0 0.0
        %630 = vmatmul.mubr.f32.gmra.mrb[0].mxu0 %v461
        %v631 = vpop.f32.mrb[0].mxu0
        %v632 = vadd.f32 %v445, %v631
        %v633 = vpop.f32.mrb[0].mxu0
        %v634 = vadd.f32 %v449, %v633
        %635 = vmatprep.mubr.f32.mxu0 0.0
        %636 = vmatmul.mubr.f32.gmra.mrb[0].mxu0 %v464
        %v637 = vpop.f32.mrb[0].mxu0
        %v638 = vadd.f32 %v445, %v637
        %v639 = vpop.f32.mrb[0].mxu0
        %v640 = vadd.f32 %v449, %v639
        %641 = vmatprep.mubr.f32.mxu0 0.0
        %642 = vmatmul.mubr.f32.gmra.mrb[0].mxu0 %v467
        %v643 = vpop.f32.mrb[0].mxu0
        %v644 = vadd.f32 %v445, %v643
        %v645 = vpop.f32.mrb[0].mxu0
        %v646 = vadd.f32 %v449, %v645
        %647 = vmatprep.mubr.f32.mxu0 0.0
        %648 = vmatmul.mubr.f32.gmra.mrb[0].mxu0 %v470
        %v649 = vpop.f32.mrb[0].mxu0
        %v650 = vadd.f32 %v445, %v649
        %v651 = vpop.f32.mrb[0].mxu0
        %v652 = vadd.f32 %v449, %v651
        %653 = vmatprep.mubr.f32.mxu0 0.0
        %654 = vmatmul.mubr.f32.gmra.mrb[0].mxu0 %v473
        %v655 = vpop.f32.mrb[0].mxu0
        %v656 = vadd.f32 %v445, %v655
        %v657 = vpop.f32.mrb[0].mxu0
        %v658 = vadd.f32 %v449, %v657
        %659 = vmatprep.mubr.f32.mxu0 0.0
        %660 = vmatmul.mubr.f32.gmra.mrb[0].mxu0 %v476
        %v661 = vpop.f32.mrb[0].mxu0
        %v662 = vadd.f32 %v445, %v661
        %v663 = vpop.f32.mrb[0].mxu0
        %v664 = vadd.f32 %v449, %v663
        %665 = vmatprep.mubr.f32.mxu0 0.0
        %666 = vmatmul.mubr.f32.gmra.mrb[0].mxu0 %v479
        %v667 = vpop.f32.mrb[0].mxu0
        %v668 = vadd.f32 %v445, %v667
        %v669 = vpop.f32.mrb[0].mxu0
        %v670 = vadd.f32 %v449, %v669
        %671 = vmatprep.mubr.f32.mxu0 0.0
        %672 = vmatmul.mubr.f32.gmra.mrb[0].mxu0 %v482
        %v673 = vpop.f32.mrb[0].mxu0
        %v674 = vadd.f32 %v445, %v673
        %v675 = vpop.f32.mrb[0].mxu0
        %v676 = vadd.f32 %v449, %v675
        %677 = vmatprep.mubr.f32.mxu0 0.0
        %678 = vmatmul.mubr.f32.gmra.mrb[0].mxu0 %v485
        %v679 = vpop.f32.mrb[0].mxu0
        %v680 = vadd.f32 %v445, %v679
        %v681 = vpop.f32.mrb[0].mxu0
        %v682 = vadd.f32 %v449, %v681
        %683 = vmatprep.mubr.f32.mxu0 0.0
        %684 = vmatmul.mubr.f32.gmra.mrb[0].mxu0 %v488
        %v685 = vpop.f32.mrb[0].mxu0
        %v686 = vadd.f32 %v445, %v685
        %v687 = vpop.f32.mrb[0].mxu0
        %v688 = vadd.f32 %v449, %v687
        %689 = vmatprep.mubr.f32.mxu0 0.0
        %690 = vmatmul.mubr.f32.gmra.mrb[0].mxu0 %v491
        %v691 = vpop.f32.mrb[0].mxu0
        %v692 = vadd.f32 %v445, %v691
        %v693 = vpop.f32.mrb[0].mxu0
        %v694 = vadd.f32 %v449, %v693
        %695 = vmatprep.mubr.f32.mxu0 0.0
        %696 = vmatmul.mubr.f32.gmra.mrb[0].mxu0 %v494
        %v697 = vpop.f32.mrb[0].mxu0
        %v698 = vadd.f32 %v445, %v697
        %v699 = vpop.f32.mrb[0].mxu0
        %v700 = vadd.f32 %v449, %v699
        %701 = vmatprep.mubr.f32.mxu0 0.0
        %702 = vmatmul.mubr.f32.gmra.mrb[0].mxu0 %v497
        %v703 = vpop.f32.mrb[0].mxu0
        %v704 = vadd.f32 %v445, %v703
        %v705 = vpop.f32.mrb[0].mxu0
        %v706 = vadd.f32 %v449, %v705
        %707 = vmatprep.mubr.f32.mxu0 0.0
        %708 = vmatmul.mubr.f32.gmra.mrb[0].mxu0 %v500
        %v709 = vpop.f32.mrb[0].mxu0
        %v710 = vadd.f32 %v445, %v709
        %v711 = vpop.f32.mrb[0].mxu0
        %v712 = vadd.f32 %v449, %v711
        %713 = vmatprep.mubr.f32.mxu0 0.0
        %714 = vmatmul.mubr.f32.gmra.mrb[0].mxu0 %v503
        %v715 = vpop.f32.mrb[0].mxu0
        %v716 = vadd.f32 %v445, %v715
        %v717 = vpop.f32.mrb[0].mxu0
        %v718 = vadd.f32 %v449, %v717
        %719 = vmatprep.mubr.f32.mxu0 0.0
        %720 = vmatmul.mubr.f32.gmra.mrb[0].mxu0 %v506
        %v721 = vpop.f32.mrb[0].mxu0
        %v722 = vadd.f32 %v445, %v721
        %v723 = vpop.f32.mrb[0].mxu0
        %v724 = vadd.f32 %v449, %v723
        %725 = vmatprep.mubr.f32.mxu0 0.0
        %726 = vmatmul.mubr.f32.gmra.mrb[0].mxu0 %v509
        %v727 = vpop.f32.mrb[0].mxu0
        %v728 = vadd.f32 %v445, %v727
        %v729 = vpop.f32.mrb[0].mxu0
        %v730 = vadd.f32 %v449, %v729
        %731 = vmatprep.mubr.f32.mxu0 0.0
        %732 = vmatmul.mubr.f32.gmra.mrb[0].mxu0 %v512
        %v733 = vpop.f32.mrb[0].mxu0
        %v734 = vadd.f32 %v445, %v733
        %v735 = vpop.f32.mrb[0].mxu0
        %v736 = vadd.f32 %v449, %v735
        %737 = vmatprep.mubr.f32.mxu0 0.0
        %738 = vmatmul.mubr.f32.gmra.mrb[0].mxu0 %v515
        %v739 = vpop.f32.mrb[0].mxu0
        %v740 = vadd.f32 %v445, %v739
        %v741 = vpop.f32.mrb[0].mxu0
        %v742 = vadd.f32 %v449, %v741
        %743 = vmatprep.mubr.f32.mxu0 0.0
        %744 = vmatmul.mubr.f32.gmra.mrb[0].mxu0 %v518
        %v745 = vpop.f32.mrb[0].mxu0
        %v746 = vadd.f32 %v445, %v745
        %v747 = vpop.f32.mrb[0].mxu0
        %v748 = vadd.f32 %v449, %v747
        %749 = vmatprep.mubr.f32.mxu0 0.0
        %750 = vmatmul.mubr.f32.gmra.mrb[0].mxu0 %v521
        %v751 = vpop.f32.mrb[0].mxu0
        %v752 = vadd.f32 %v445, %v751
        %v753 = vpop.f32.mrb[0].mxu0
        %v754 = vadd.f32 %v449, %v753
        %755 = vmatprep.mubr.f32.mxu0 0.0
        %756 = vmatmul.mubr.f32.gmra.mrb[0].mxu0 %v524
        %v757 = vpop.f32.mrb[0].mxu0
        %v758 = vadd.f32 %v445, %v757
        %v759 = vpop.f32.mrb[0].mxu0
        %v760 = vadd.f32 %v449, %v759
        %761 = vmatprep.mubr.f32.mxu0 0.0
        %762 = vmatmul.mubr.f32.gmra.mrb[0].mxu0 %v527
        %v763 = vpop.f32.mrb[0].mxu0
        %v764 = vadd.f32 %v445, %v763
        %v765 = vpop.f32.mrb[0].mxu0
        %v766 = vadd.f32 %v449, %v765
        %767 = vmatprep.mubr.f32.mxu0 0.0
        %768 = vmatmul.mubr.f32.gmra.mrb[0].mxu0 %v530
        %v769 = vpop.f32.mrb[0].mxu0
        %v770 = vadd.f32 %v445, %v769
        %v771 = vpop.f32.mrb[0].mxu0
        %v772 = vadd.f32 %v449, %v771
        %773 = vmatprep.mubr.f32.mxu0 0.0
        %774 = vmatmul.mubr.f32.gmra.mrb[0].mxu0 %v533
        %v775 = vpop.f32.mrb[0].mxu0
        %v776 = vadd.f32 %v445, %v775
        %v777 = vpop.f32.mrb[0].mxu0
        %v778 = vadd.f32 %v449, %v777
        %779 = vmatprep.mubr.f32.mxu0 0.0
        %780 = vmatmul.mubr.f32.gmra.mrb[0].mxu0 %v536
        %v781 = vpop.f32.mrb[0].mxu0
        %v782 = vadd.f32 %v445, %v781
        %v783 = vpop.f32.mrb[0].mxu0
        %v784 = vadd.f32 %v449, %v783
        %785 = vmatprep.mubr.f32.mxu0 0.0
        %786 = vmatmul.mubr.f32.gmra.mrb[0].mxu0 %v539
        %v787 = vpop.f32.mrb[0].mxu0
        %v788 = vadd.f32 %v445, %v787
        %v789 = vpop.f32.mrb[0].mxu0
        %v790 = vadd.f32 %v449, %v789
        %791 = vmatprep.mubr.f32.mxu0 0.0
        %792 = vmatmul.mubr.f32.gmra.mrb[0].mxu0 %v542
        %v793 = vpop.f32.mrb[0].mxu0
        %v794 = vadd.f32 %v445, %v793
        %v795 = vpop.f32.mrb[0].mxu0
        %v796 = vadd.f32 %v449, %v795
        %797 = vmatprep.mubr.f32.mxu0 0.0
        %798 = vmatmul.mubr.f32.gmra.mrb[0].mxu0 %v545
        %v799 = vpop.f32.mrb[0].mxu0
        %v800 = vadd.f32 %v445, %v799
        %v801 = vpop.f32.mrb[0].mxu0
        %v802 = vadd.f32 %v449, %v801
        %803 = vdwg.mxu0
        %v804 = vmax.f32 %v614, 0.0
        %v805 = vmax.f32 %v616, 0.0
        %v806 = vmax.f32 %v620, 0.0
        %v807 = vmax.f32 %v622, 0.0
        %v808 = vmax.f32 %v626, 0.0
        %v809 = vmax.f32 %v628, 0.0
        %v810 = vmax.f32 %v632, 0.0
        %v811 = vmax.f32 %v634, 0.0
        %v812 = vmax.f32 %v638, 0.0
        %v813 = vmax.f32 %v640, 0.0
        %v814 = vmax.f32 %v644, 0.0
        %v815 = vmax.f32 %v646, 0.0
        %v816 = vmax.f32 %v650, 0.0
        %v817 = vmax.f32 %v652, 0.0
        %v818 = vmax.f32 %v656, 0.0
        %v819 = vmax.f32 %v658, 0.0
        %v820 = vmax.f32 %v662, 0.0
        %v821 = vmax.f32 %v664, 0.0
        %v822 = vmax.f32 %v668, 0.0
        %v823 = vmax.f32 %v670, 0.0
        %v824 = vmax.f32 %v674, 0.0
        %v825 = vmax.f32 %v676, 0.0
        %v826 = vmax.f32 %v680, 0.0
        %v827 = vmax.f32 %v682, 0.0
        %v828 = vmax.f32 %v686, 0.0
        %v829 = vmax.f32 %v688, 0.0
        %v830 = vmax.f32 %v692, 0.0
        %v831 = vmax.f32 %v694, 0.0
        %v832 = vmax.f32 %v698, 0.0
        %v833 = vmax.f32 %v700, 0.0
        %v834 = vmax.f32 %v704, 0.0
        %v835 = vmax.f32 %v706, 0.0
        %v836 = vmax.f32 %v710, 0.0
        %v837 = vmax.f32 %v712, 0.0
        %v838 = vmax.f32 %v716, 0.0
        %v839 = vmax.f32 %v718, 0.0
        %v840 = vmax.f32 %v722, 0.0
        %v841 = vmax.f32 %v724, 0.0
        %v842 = vmax.f32 %v728, 0.0
        %v843 = vmax.f32 %v730, 0.0
        %v844 = vmax.f32 %v734, 0.0
        %v845 = vmax.f32 %v736, 0.0
        %v846 = vmax.f32 %v740, 0.0
        %v847 = vmax.f32 %v742, 0.0
        %v848 = vmax.f32 %v746, 0.0
        %v849 = vmax.f32 %v748, 0.0
        %v850 = vmax.f32 %v752, 0.0
        %v851 = vmax.f32 %v754, 0.0
        %v852 = vmax.f32 %v758, 0.0
        %v853 = vmax.f32 %v760, 0.0
        %v854 = vmax.f32 %v764, 0.0
        %v855 = vmax.f32 %v766, 0.0
        %v856 = vmax.f32 %v770, 0.0
        %v857 = vmax.f32 %v772, 0.0
        %v858 = vmax.f32 %v776, 0.0
        %v859 = vmax.f32 %v778, 0.0
        %v860 = vmax.f32 %v782, 0.0
        %v861 = vmax.f32 %v784, 0.0
        %v862 = vmax.f32 %v788, 0.0
        %v863 = vmax.f32 %v790, 0.0
        %v864 = vmax.f32 %v794, 0.0
        %v865 = vmax.f32 %v796, 0.0
        %v866 = vmax.f32 %v800, 0.0
        %v867 = vmax.f32 %v802, 0.0
        %v868 = vlaneseq
        %v869 = vshrl.u32 %v868, 7
        %v870 = vsub.s32 1, %v869
        %v871 = vrot.slane %v422, %v870
        %v872 = vlaneseq
        %v873 = vshrl.u32 %v872, 7
        %v874 = vsub.s32 5, %v873
        %v875 = vrot.slane %v422, %v874
        %v878 = vlaneseq
        %v879 = vshrl.u32 %v878, 7
        %v880 = vsub.s32 1, %v879
        %v881 = vrot.slane %v871, %v880
        %v882 = vlaneseq
        %v883 = vshrl.u32 %v882, 7
        %v884 = vsub.s32 1, %v883
        %v885 = vrot.slane %v875, %v884
        %v886 = vmul.f32 %v804, %v881
        %v887 = vmul.f32 %v805, %v885
        %v888 = vmul.f32 %v806, %v881
        %v889 = vmul.f32 %v807, %v885
        %v890 = vmul.f32 %v808, %v881
        %v891 = vmul.f32 %v809, %v885
        %v892 = vmul.f32 %v810, %v881
        %v893 = vmul.f32 %v811, %v885
        %v894 = vmul.f32 %v812, %v881
        %v895 = vmul.f32 %v813, %v885
        %v896 = vmul.f32 %v814, %v881
        %v897 = vmul.f32 %v815, %v885
        %v898 = vmul.f32 %v816, %v881
        %v899 = vmul.f32 %v817, %v885
        %v900 = vmul.f32 %v818, %v881
        %v901 = vmul.f32 %v819, %v885
        %v902 = vmul.f32 %v820, %v881
        %v903 = vmul.f32 %v821, %v885
        %v904 = vmul.f32 %v822, %v881
        %v905 = vmul.f32 %v823, %v885
        %v906 = vmul.f32 %v824, %v881
        %v907 = vmul.f32 %v825, %v885
        %v908 = vmul.f32 %v826, %v881
        %v909 = vmul.f32 %v827, %v885
        %v910 = vmul.f32 %v828, %v881
        %v911 = vmul.f32 %v829, %v885
        %v912 = vmul.f32 %v830, %v881
        %v913 = vmul.f32 %v831, %v885
        %v914 = vmul.f32 %v832, %v881
        %v915 = vmul.f32 %v833, %v885
        %v916 = vmul.f32 %v834, %v881
        %v917 = vmul.f32 %v835, %v885
        %v918 = vmul.f32 %v836, %v881
        %v919 = vmul.f32 %v837, %v885
        %v920 = vmul.f32 %v838, %v881
        %v921 = vmul.f32 %v839, %v885
        %v922 = vmul.f32 %v840, %v881
        %v923 = vmul.f32 %v841, %v885
        %v924 = vmul.f32 %v842, %v881
        %v925 = vmul.f32 %v843, %v885
        %v926 = vmul.f32 %v844, %v881
        %v927 = vmul.f32 %v845, %v885
        %v928 = vmul.f32 %v846, %v881
        %v929 = vmul.f32 %v847, %v885
        %v930 = vmul.f32 %v848, %v881
        %v931 = vmul.f32 %v849, %v885
        %v932 = vmul.f32 %v850, %v881
        %v933 = vmul.f32 %v851, %v885
        %v934 = vmul.f32 %v852, %v881
        %v935 = vmul.f32 %v853, %v885
        %v936 = vmul.f32 %v854, %v881
        %v937 = vmul.f32 %v855, %v885
        %v938 = vmul.f32 %v856, %v881
        %v939 = vmul.f32 %v857, %v885
        %v940 = vmul.f32 %v858, %v881
        %v941 = vmul.f32 %v859, %v885
        %v942 = vmul.f32 %v860, %v881
        %v943 = vmul.f32 %v861, %v885
        %v944 = vmul.f32 %v862, %v881
        %v945 = vmul.f32 %v863, %v885
        %v946 = vmul.f32 %v864, %v881
        %v947 = vmul.f32 %v865, %v885
        %v948 = vmul.f32 %v866, %v881
        %v949 = vmul.f32 %v867, %v885
        %v950 = vlaneseq
        %v951 = vshrl.u32 %v950, 7
        %v952 = vsub.s32 2, %v951
        %v953 = vrot.slane %v422, %v952
        %v954 = vlaneseq
        %v955 = vshrl.u32 %v954, 7
        %v956 = vsub.s32 6, %v955
        %v957 = vrot.slane %v422, %v956
        %v960 = vlaneseq
        %v961 = vshrl.u32 %v960, 7
        %v962 = vsub.s32 2, %v961
        %v963 = vrot.slane %v953, %v962
        %v964 = vlaneseq
        %v965 = vshrl.u32 %v964, 7
        %v966 = vsub.s32 2, %v965
        %v967 = vrot.slane %v957, %v966
        %v968 = vadd.f32 %v886, %v963
        %v969 = vadd.f32 %v887, %v967
        %v970 = vadd.f32 %v888, %v963
        %v971 = vadd.f32 %v889, %v967
        %v972 = vadd.f32 %v890, %v963
        %v973 = vadd.f32 %v891, %v967
        %v974 = vadd.f32 %v892, %v963
        %v975 = vadd.f32 %v893, %v967
        %v976 = vadd.f32 %v894, %v963
        %v977 = vadd.f32 %v895, %v967
        %v978 = vadd.f32 %v896, %v963
        %v979 = vadd.f32 %v897, %v967
        %v980 = vadd.f32 %v898, %v963
        %v981 = vadd.f32 %v899, %v967
        %v982 = vadd.f32 %v900, %v963
        %v983 = vadd.f32 %v901, %v967
        %v984 = vadd.f32 %v902, %v963
        %v985 = vadd.f32 %v903, %v967
        %v986 = vadd.f32 %v904, %v963
        %v987 = vadd.f32 %v905, %v967
        %v988 = vadd.f32 %v906, %v963
        %v989 = vadd.f32 %v907, %v967
        %v990 = vadd.f32 %v908, %v963
        %v991 = vadd.f32 %v909, %v967
        %v992 = vadd.f32 %v910, %v963
        %v993 = vadd.f32 %v911, %v967
        %v994 = vadd.f32 %v912, %v963
        %v995 = vadd.f32 %v913, %v967
        %v996 = vadd.f32 %v914, %v963
        %v997 = vadd.f32 %v915, %v967
        %v998 = vadd.f32 %v916, %v963
        %v999 = vadd.f32 %v917, %v967
        %v1000 = vadd.f32 %v918, %v963
        %v1001 = vadd.f32 %v919, %v967
        %v1002 = vadd.f32 %v920, %v963
        %v1003 = vadd.f32 %v921, %v967
        %v1004 = vadd.f32 %v922, %v963
        %v1005 = vadd.f32 %v923, %v967
        %v1006 = vadd.f32 %v924, %v963
        %v1007 = vadd.f32 %v925, %v967
        %v1008 = vadd.f32 %v926, %v963
        %v1009 = vadd.f32 %v927, %v967
        %v1010 = vadd.f32 %v928, %v963
        %v1011 = vadd.f32 %v929, %v967
        %v1012 = vadd.f32 %v930, %v963
        %v1013 = vadd.f32 %v931, %v967
        %v1014 = vadd.f32 %v932, %v963
        %v1015 = vadd.f32 %v933, %v967
        %v1016 = vadd.f32 %v934, %v963
        %v1017 = vadd.f32 %v935, %v967
        %v1018 = vadd.f32 %v936, %v963
        %v1019 = vadd.f32 %v937, %v967
        %v1020 = vadd.f32 %v938, %v963
        %v1021 = vadd.f32 %v939, %v967
        %v1022 = vadd.f32 %v940, %v963
        %v1023 = vadd.f32 %v941, %v967
        %v1024 = vadd.f32 %v942, %v963
        %v1025 = vadd.f32 %v943, %v967
        %v1026 = vadd.f32 %v944, %v963
        %v1027 = vadd.f32 %v945, %v967
        %v1028 = vadd.f32 %v946, %v963
        %v1029 = vadd.f32 %v947, %v967
        %v1030 = vadd.f32 %v948, %v963
        %v1031 = vadd.f32 %v949, %v967
        %v1032 = vld [vmem:[%s4] sm:$0x7]
        %v1033 = vld [vmem:[%s3] sm:$0xff]
        %v1034 = vld [vmem:[%s3 + $0x8] sm:$0xff]
        %v1035 = vld [vmem:[%s3 + $0x10] sm:$0xff]
        %v1036 = vld [vmem:[%s3 + $0x18] sm:$0xff]
        %v1037 = vld [vmem:[%s3 + $0x20] sm:$0xff]
        %v1038 = vld [vmem:[%s3 + $0x28] sm:$0xff]
        %v1039 = vld [vmem:[%s3 + $0x30] sm:$0xff]
        %v1040 = vld [vmem:[%s3 + $0x38] sm:$0xff]
        %v1041 = vld [vmem:[%s3 + $0x40] sm:$0xff]
        %v1042 = vld [vmem:[%s3 + $0x48] sm:$0xff]
        %v1043 = vld [vmem:[%s3 + $0x50] sm:$0xff]
        %v1044 = vld [vmem:[%s3 + $0x58] sm:$0xff]
        %v1045 = vld [vmem:[%s3 + $0x60] sm:$0xff]
        %v1046 = vld [vmem:[%s3 + $0x68] sm:$0xff]
        %v1047 = vld [vmem:[%s3 + $0x70] sm:$0xff]
        %v1048 = vld [vmem:[%s3 + $0x78] sm:$0xff]
        %v1049 = vld [vmem:[%s3 + $0x80] sm:$0xff]
        %v1050 = vld [vmem:[%s3 + $0x88] sm:$0xff]
        %v1051 = vld [vmem:[%s3 + $0x90] sm:$0xff]
        %v1052 = vld [vmem:[%s3 + $0x98] sm:$0xff]
        %v1053 = vld [vmem:[%s3 + $0xa0] sm:$0xff]
        %v1054 = vld [vmem:[%s3 + $0xa8] sm:$0xff]
        %v1055 = vld [vmem:[%s3 + $0xb0] sm:$0xff]
        %v1056 = vld [vmem:[%s3 + $0xb8] sm:$0xff]
        %v1057 = vld [vmem:[%s3 + $0xc0] sm:$0xff]
        %v1058 = vld [vmem:[%s3 + $0xc8] sm:$0xff]
        %v1059 = vld [vmem:[%s3 + $0xd0] sm:$0xff]
        %v1060 = vld [vmem:[%s3 + $0xd8] sm:$0xff]
        %v1061 = vld [vmem:[%s3 + $0xe0] sm:$0xff]
        %v1062 = vld [vmem:[%s3 + $0xe8] sm:$0xff]
        %v1063 = vld [vmem:[%s3 + $0xf0] sm:$0xff]
        %v1064 = vld [vmem:[%s3 + $0xf8] sm:$0xff]
        %v1065 = vlaneseq
        %v1066 = vshrl.u32 %v1065, 7
        %v1067 = vsub.s32 0, %v1066
        %v1068 = vrot.slane %v1032, %v1067
        %1069 = vmatprep.subr.mxu0 0.0
        %1070 = vmatpush1.msra.mxu0 %v1033
        %1071 = vmatprep.subr.mxu0 0.0
        %1072 = vmatpush1.msra.mxu0 %v1034
        %1073 = vmatprep.subr.mxu0 0.0
        %1074 = vmatpush1.msra.mxu0 %v1035
        %1075 = vmatprep.subr.mxu0 0.0
        %1076 = vmatpush1.msra.mxu0 %v1036
        %1077 = vmatprep.subr.mxu0 0.0
        %1078 = vmatpush1.msra.mxu0 %v1037
        %1079 = vmatprep.subr.mxu0 0.0
        %1080 = vmatpush1.msra.mxu0 %v1038
        %1081 = vmatprep.subr.mxu0 0.0
        %1082 = vmatpush1.msra.mxu0 %v1039
        %1083 = vmatprep.subr.mxu0 0.0
        %1084 = vmatpush1.msra.mxu0 %v1040
        %1085 = vmatprep.subr.mxu0 0.0
        %1086 = vmatpush1.msra.mxu0 %v1041
        %1087 = vmatprep.subr.mxu0 0.0
        %1088 = vmatpush1.msra.mxu0 %v1042
        %1089 = vmatprep.subr.mxu0 0.0
        %1090 = vmatpush1.msra.mxu0 %v1043
        %1091 = vmatprep.subr.mxu0 0.0
        %1092 = vmatpush1.msra.mxu0 %v1044
        %1093 = vmatprep.subr.mxu0 0.0
        %1094 = vmatpush1.msra.mxu0 %v1045
        %1095 = vmatprep.subr.mxu0 0.0
        %1096 = vmatpush1.msra.mxu0 %v1046
        %1097 = vmatprep.subr.mxu0 0.0
        %1098 = vmatpush1.msra.mxu0 %v1047
        %1099 = vmatprep.subr.mxu0 0.0
        %1100 = vmatpush1.msra.mxu0 %v1048
        %1101 = vmatprep.subr.mxu0 0.0
        %1102 = vmatpush1.msra.mxu0 %v1049
        %1103 = vmatprep.subr.mxu0 0.0
        %1104 = vmatpush1.msra.mxu0 %v1050
        %1105 = vmatprep.subr.mxu0 0.0
        %1106 = vmatpush1.msra.mxu0 %v1051
        %1107 = vmatprep.subr.mxu0 0.0
        %1108 = vmatpush1.msra.mxu0 %v1052
        %1109 = vmatprep.subr.mxu0 0.0
        %1110 = vmatpush1.msra.mxu0 %v1053
        %1111 = vmatprep.subr.mxu0 0.0
        %1112 = vmatpush1.msra.mxu0 %v1054
        %1113 = vmatprep.subr.mxu0 0.0
        %1114 = vmatpush1.msra.mxu0 %v1055
        %1115 = vmatprep.subr.mxu0 0.0
        %1116 = vmatpush1.msra.mxu0 %v1056
        %1117 = vmatprep.subr.mxu0 0.0
        %1118 = vmatpush1.msra.mxu0 %v1057
        %1119 = vmatprep.subr.mxu0 0.0
        %1120 = vmatpush1.msra.mxu0 %v1058
        %1121 = vmatprep.subr.mxu0 0.0
        %1122 = vmatpush1.msra.mxu0 %v1059
        %1123 = vmatprep.subr.mxu0 0.0
        %1124 = vmatpush1.msra.mxu0 %v1060
        %1125 = vmatprep.subr.mxu0 0.0
        %1126 = vmatpush1.msra.mxu0 %v1061
        %1127 = vmatprep.subr.mxu0 0.0
        %1128 = vmatpush1.msra.mxu0 %v1062
        %1129 = vmatprep.subr.mxu0 0.0
        %1130 = vmatpush1.msra.mxu0 %v1063
        %1131 = vmatprep.subr.mxu0 0.0
        %1132 = vmatpush1.msra.mxu0 %v1064
        %1133 = vmatprep.mubr.f32.mxu0 %v969
        %1134 = vmatmul.mubr.f32.gmra.mrb[0].mxu0 %v968
        %v1135 = vpop.f32.mrb[0].mxu0
        %v1136 = vadd.f32 %v1068, %v1135
        %v1137 = vpop.f32.mrb[0].mxu0
        %1138 = vmatprep.mubr.f32.mxu0 %v971
        %1139 = vmatmul.mubr.f32.gmra.mrb[0].mxu0 %v970
        %v1140 = vpop.f32.mrb[0].mxu0
        %v1141 = vadd.f32 %v1068, %v1140
        %v1142 = vpop.f32.mrb[0].mxu0
        %1143 = vmatprep.mubr.f32.mxu0 %v973
        %1144 = vmatmul.mubr.f32.gmra.mrb[0].mxu0 %v972
        %v1145 = vpop.f32.mrb[0].mxu0
        %v1146 = vadd.f32 %v1068, %v1145
        %v1147 = vpop.f32.mrb[0].mxu0
        %1148 = vmatprep.mubr.f32.mxu0 %v975
        %1149 = vmatmul.mubr.f32.gmra.mrb[0].mxu0 %v974
        %v1150 = vpop.f32.mrb[0].mxu0
        %v1151 = vadd.f32 %v1068, %v1150
        %v1152 = vpop.f32.mrb[0].mxu0
        %1153 = vmatprep.mubr.f32.mxu0 %v977
        %1154 = vmatmul.mubr.f32.gmra.mrb[0].mxu0 %v976
        %v1155 = vpop.f32.mrb[0].mxu0
        %v1156 = vadd.f32 %v1068, %v1155
        %v1157 = vpop.f32.mrb[0].mxu0
        %1158 = vmatprep.mubr.f32.mxu0 %v979
        %1159 = vmatmul.mubr.f32.gmra.mrb[0].mxu0 %v978
        %v1160 = vpop.f32.mrb[0].mxu0
        %v1161 = vadd.f32 %v1068, %v1160
        %v1162 = vpop.f32.mrb[0].mxu0
        %1163 = vmatprep.mubr.f32.mxu0 %v981
        %1164 = vmatmul.mubr.f32.gmra.mrb[0].mxu0 %v980
        %v1165 = vpop.f32.mrb[0].mxu0
        %v1166 = vadd.f32 %v1068, %v1165
        %v1167 = vpop.f32.mrb[0].mxu0
        %1168 = vmatprep.mubr.f32.mxu0 %v983
        %1169 = vmatmul.mubr.f32.gmra.mrb[0].mxu0 %v982
        %v1170 = vpop.f32.mrb[0].mxu0
        %v1171 = vadd.f32 %v1068, %v1170
        %v1172 = vpop.f32.mrb[0].mxu0
        %1173 = vmatprep.mubr.f32.mxu0 %v985
        %1174 = vmatmul.mubr.f32.gmra.mrb[0].mxu0 %v984
        %v1175 = vpop.f32.mrb[0].mxu0
        %v1176 = vadd.f32 %v1068, %v1175
        %v1177 = vpop.f32.mrb[0].mxu0
        %1178 = vmatprep.mubr.f32.mxu0 %v987
        %1179 = vmatmul.mubr.f32.gmra.mrb[0].mxu0 %v986
        %v1180 = vpop.f32.mrb[0].mxu0
        %v1181 = vadd.f32 %v1068, %v1180
        %v1182 = vpop.f32.mrb[0].mxu0
        %1183 = vmatprep.mubr.f32.mxu0 %v989
        %1184 = vmatmul.mubr.f32.gmra.mrb[0].mxu0 %v988
        %v1185 = vpop.f32.mrb[0].mxu0
        %v1186 = vadd.f32 %v1068, %v1185
        %v1187 = vpop.f32.mrb[0].mxu0
        %1188 = vmatprep.mubr.f32.mxu0 %v991
        %1189 = vmatmul.mubr.f32.gmra.mrb[0].mxu0 %v990
        %v1190 = vpop.f32.mrb[0].mxu0
        %v1191 = vadd.f32 %v1068, %v1190
        %v1192 = vpop.f32.mrb[0].mxu0
        %1193 = vmatprep.mubr.f32.mxu0 %v993
        %1194 = vmatmul.mubr.f32.gmra.mrb[0].mxu0 %v992
        %v1195 = vpop.f32.mrb[0].mxu0
        %v1196 = vadd.f32 %v1068, %v1195
        %v1197 = vpop.f32.mrb[0].mxu0
        %1198 = vmatprep.mubr.f32.mxu0 %v995
        %1199 = vmatmul.mubr.f32.gmra.mrb[0].mxu0 %v994
        %v1200 = vpop.f32.mrb[0].mxu0
        %v1201 = vadd.f32 %v1068, %v1200
        %v1202 = vpop.f32.mrb[0].mxu0
        %1203 = vmatprep.mubr.f32.mxu0 %v997
        %1204 = vmatmul.mubr.f32.gmra.mrb[0].mxu0 %v996
        %v1205 = vpop.f32.mrb[0].mxu0
        %v1206 = vadd.f32 %v1068, %v1205
        %v1207 = vpop.f32.mrb[0].mxu0
        %1208 = vmatprep.mubr.f32.mxu0 %v999
        %1209 = vmatmul.mubr.f32.gmra.mrb[0].mxu0 %v998
        %v1210 = vpop.f32.mrb[0].mxu0
        %v1211 = vadd.f32 %v1068, %v1210
        %v1212 = vpop.f32.mrb[0].mxu0
        %1213 = vmatprep.mubr.f32.mxu0 %v1001
        %1214 = vmatmul.mubr.f32.gmra.mrb[0].mxu0 %v1000
        %v1215 = vpop.f32.mrb[0].mxu0
        %v1216 = vadd.f32 %v1068, %v1215
        %v1217 = vpop.f32.mrb[0].mxu0
        %1218 = vmatprep.mubr.f32.mxu0 %v1003
        %1219 = vmatmul.mubr.f32.gmra.mrb[0].mxu0 %v1002
        %v1220 = vpop.f32.mrb[0].mxu0
        %v1221 = vadd.f32 %v1068, %v1220
        %v1222 = vpop.f32.mrb[0].mxu0
        %1223 = vmatprep.mubr.f32.mxu0 %v1005
        %1224 = vmatmul.mubr.f32.gmra.mrb[0].mxu0 %v1004
        %v1225 = vpop.f32.mrb[0].mxu0
        %v1226 = vadd.f32 %v1068, %v1225
        %v1227 = vpop.f32.mrb[0].mxu0
        %1228 = vmatprep.mubr.f32.mxu0 %v1007
        %1229 = vmatmul.mubr.f32.gmra.mrb[0].mxu0 %v1006
        %v1230 = vpop.f32.mrb[0].mxu0
        %v1231 = vadd.f32 %v1068, %v1230
        %v1232 = vpop.f32.mrb[0].mxu0
        %1233 = vmatprep.mubr.f32.mxu0 %v1009
        %1234 = vmatmul.mubr.f32.gmra.mrb[0].mxu0 %v1008
        %v1235 = vpop.f32.mrb[0].mxu0
        %v1236 = vadd.f32 %v1068, %v1235
        %v1237 = vpop.f32.mrb[0].mxu0
        %1238 = vmatprep.mubr.f32.mxu0 %v1011
        %1239 = vmatmul.mubr.f32.gmra.mrb[0].mxu0 %v1010
        %v1240 = vpop.f32.mrb[0].mxu0
        %v1241 = vadd.f32 %v1068, %v1240
        %v1242 = vpop.f32.mrb[0].mxu0
        %1243 = vmatprep.mubr.f32.mxu0 %v1013
        %1244 = vmatmul.mubr.f32.gmra.mrb[0].mxu0 %v1012
        %v1245 = vpop.f32.mrb[0].mxu0
        %v1246 = vadd.f32 %v1068, %v1245
        %v1247 = vpop.f32.mrb[0].mxu0
        %1248 = vmatprep.mubr.f32.mxu0 %v1015
        %1249 = vmatmul.mubr.f32.gmra.mrb[0].mxu0 %v1014
        %v1250 = vpop.f32.mrb[0].mxu0
        %v1251 = vadd.f32 %v1068, %v1250
        %v1252 = vpop.f32.mrb[0].mxu0
        %1253 = vmatprep.mubr.f32.mxu0 %v1017
        %1254 = vmatmul.mubr.f32.gmra.mrb[0].mxu0 %v1016
        %v1255 = vpop.f32.mrb[0].mxu0
        %v1256 = vadd.f32 %v1068, %v1255
        %v1257 = vpop.f32.mrb[0].mxu0
        %1258 = vmatprep.mubr.f32.mxu0 %v1019
        %1259 = vmatmul.mubr.f32.gmra.mrb[0].mxu0 %v1018
        %v1260 = vpop.f32.mrb[0].mxu0
        %v1261 = vadd.f32 %v1068, %v1260
        %v1262 = vpop.f32.mrb[0].mxu0
        %1263 = vmatprep.mubr.f32.mxu0 %v1021
        %1264 = vmatmul.mubr.f32.gmra.mrb[0].mxu0 %v1020
        %v1265 = vpop.f32.mrb[0].mxu0
        %v1266 = vadd.f32 %v1068, %v1265
        %v1267 = vpop.f32.mrb[0].mxu0
        %1268 = vmatprep.mubr.f32.mxu0 %v1023
        %1269 = vmatmul.mubr.f32.gmra.mrb[0].mxu0 %v1022
        %v1270 = vpop.f32.mrb[0].mxu0
        %v1271 = vadd.f32 %v1068, %v1270
        %v1272 = vpop.f32.mrb[0].mxu0
        %1273 = vmatprep.mubr.f32.mxu0 %v1025
        %1274 = vmatmul.mubr.f32.gmra.mrb[0].mxu0 %v1024
        %v1275 = vpop.f32.mrb[0].mxu0
        %v1276 = vadd.f32 %v1068, %v1275
        %v1277 = vpop.f32.mrb[0].mxu0
        %1278 = vmatprep.mubr.f32.mxu0 %v1027
        %1279 = vmatmul.mubr.f32.gmra.mrb[0].mxu0 %v1026
        %v1280 = vpop.f32.mrb[0].mxu0
        %v1281 = vadd.f32 %v1068, %v1280
        %v1282 = vpop.f32.mrb[0].mxu0
        %1283 = vmatprep.mubr.f32.mxu0 %v1029
        %1284 = vmatmul.mubr.f32.gmra.mrb[0].mxu0 %v1028
        %v1285 = vpop.f32.mrb[0].mxu0
        %v1286 = vadd.f32 %v1068, %v1285
        %v1287 = vpop.f32.mrb[0].mxu0
        %1288 = vmatprep.mubr.f32.mxu0 %v1031
        %1289 = vmatmul.mubr.f32.gmra.mrb[0].mxu0 %v1030
        %v1290 = vpop.f32.mrb[0].mxu0
        %v1291 = vadd.f32 %v1068, %v1290
        %v1292 = vpop.f32.mrb[0].mxu0
        %1293 = vdwg.mxu0
        %v1294 = vmax.f32 %v1136, 0.0
        %v1295 = vmax.f32 %v1141, 0.0
        %v1296 = vmax.f32 %v1146, 0.0
        %v1297 = vmax.f32 %v1151, 0.0
        %v1298 = vmax.f32 %v1156, 0.0
        %v1299 = vmax.f32 %v1161, 0.0
        %v1300 = vmax.f32 %v1166, 0.0
        %v1301 = vmax.f32 %v1171, 0.0
        %v1302 = vmax.f32 %v1176, 0.0
        %v1303 = vmax.f32 %v1181, 0.0
        %v1304 = vmax.f32 %v1186, 0.0
        %v1305 = vmax.f32 %v1191, 0.0
        %v1306 = vmax.f32 %v1196, 0.0
        %v1307 = vmax.f32 %v1201, 0.0
        %v1308 = vmax.f32 %v1206, 0.0
        %v1309 = vmax.f32 %v1211, 0.0
        %v1310 = vmax.f32 %v1216, 0.0
        %v1311 = vmax.f32 %v1221, 0.0
        %v1312 = vmax.f32 %v1226, 0.0
        %v1313 = vmax.f32 %v1231, 0.0
        %v1314 = vmax.f32 %v1236, 0.0
        %v1315 = vmax.f32 %v1241, 0.0
        %v1316 = vmax.f32 %v1246, 0.0
        %v1317 = vmax.f32 %v1251, 0.0
        %v1318 = vmax.f32 %v1256, 0.0
        %v1319 = vmax.f32 %v1261, 0.0
        %v1320 = vmax.f32 %v1266, 0.0
        %v1321 = vmax.f32 %v1271, 0.0
        %v1322 = vmax.f32 %v1276, 0.0
        %v1323 = vmax.f32 %v1281, 0.0
        %v1324 = vmax.f32 %v1286, 0.0
        %v1325 = vmax.f32 %v1291, 0.0
        %v1326 = vlaneseq
        %v1327 = vshrl.u32 %v1326, 7
        %v1328 = vsub.s32 1, %v1327
        %v1329 = vrot.slane %v1032, %v1328
        %v1330 = vmul.f32 %v1294, %v1329
        %v1331 = vmul.f32 %v1295, %v1329
        %v1332 = vmul.f32 %v1296, %v1329
        %v1333 = vmul.f32 %v1297, %v1329
        %v1334 = vmul.f32 %v1298, %v1329
        %v1335 = vmul.f32 %v1299, %v1329
        %v1336 = vmul.f32 %v1300, %v1329
        %v1337 = vmul.f32 %v1301, %v1329
        %v1338 = vmul.f32 %v1302, %v1329
        %v1339 = vmul.f32 %v1303, %v1329
        %v1340 = vmul.f32 %v1304, %v1329
        %v1341 = vmul.f32 %v1305, %v1329
        %v1342 = vmul.f32 %v1306, %v1329
        %v1343 = vmul.f32 %v1307, %v1329
        %v1344 = vmul.f32 %v1308, %v1329
        %v1345 = vmul.f32 %v1309, %v1329
        %v1346 = vmul.f32 %v1310, %v1329
        %v1347 = vmul.f32 %v1311, %v1329
        %v1348 = vmul.f32 %v1312, %v1329
        %v1349 = vmul.f32 %v1313, %v1329
        %v1350 = vmul.f32 %v1314, %v1329
        %v1351 = vmul.f32 %v1315, %v1329
        %v1352 = vmul.f32 %v1316, %v1329
        %v1353 = vmul.f32 %v1317, %v1329
        %v1354 = vmul.f32 %v1318, %v1329
        %v1355 = vmul.f32 %v1319, %v1329
        %v1356 = vmul.f32 %v1320, %v1329
        %v1357 = vmul.f32 %v1321, %v1329
        %v1358 = vmul.f32 %v1322, %v1329
        %v1359 = vmul.f32 %v1323, %v1329
        %v1360 = vmul.f32 %v1324, %v1329
        %v1361 = vmul.f32 %v1325, %v1329
        %v1362 = vlaneseq
        %v1363 = vshrl.u32 %v1362, 7
        %v1364 = vsub.s32 2, %v1363
        %v1365 = vrot.slane %v1032, %v1364
        %v1366 = vadd.f32 %v1330, %v1365
        %v1367 = vadd.f32 %v1331, %v1365
        %v1368 = vadd.f32 %v1332, %v1365
        %v1369 = vadd.f32 %v1333, %v1365
        %v1370 = vadd.f32 %v1334, %v1365
        %v1371 = vadd.f32 %v1335, %v1365
        %v1372 = vadd.f32 %v1336, %v1365
        %v1373 = vadd.f32 %v1337, %v1365
        %v1374 = vadd.f32 %v1338, %v1365
        %v1375 = vadd.f32 %v1339, %v1365
        %v1376 = vadd.f32 %v1340, %v1365
        %v1377 = vadd.f32 %v1341, %v1365
        %v1378 = vadd.f32 %v1342, %v1365
        %v1379 = vadd.f32 %v1343, %v1365
        %v1380 = vadd.f32 %v1344, %v1365
        %v1381 = vadd.f32 %v1345, %v1365
        %v1382 = vadd.f32 %v1346, %v1365
        %v1383 = vadd.f32 %v1347, %v1365
        %v1384 = vadd.f32 %v1348, %v1365
        %v1385 = vadd.f32 %v1349, %v1365
        %v1386 = vadd.f32 %v1350, %v1365
        %v1387 = vadd.f32 %v1351, %v1365
        %v1388 = vadd.f32 %v1352, %v1365
        %v1389 = vadd.f32 %v1353, %v1365
        %v1390 = vadd.f32 %v1354, %v1365
        %v1391 = vadd.f32 %v1355, %v1365
        %v1392 = vadd.f32 %v1356, %v1365
        %v1393 = vadd.f32 %v1357, %v1365
        %v1394 = vadd.f32 %v1358, %v1365
        %v1395 = vadd.f32 %v1359, %v1365
        %v1396 = vadd.f32 %v1360, %v1365
        %v1397 = vadd.f32 %v1361, %v1365
        %v1398 = vld [vmem:[%s6] sm:$0x7]
        %v1399 = vld [vmem:[%s5] sm:$0xff]
        %v1400 = vld [vmem:[%s5 + $0x8] sm:$0xff]
        %v1401 = vld [vmem:[%s5 + $0x10] sm:$0xff]
        %v1402 = vld [vmem:[%s5 + $0x18] sm:$0xff]
        %v1403 = vld [vmem:[%s5 + $0x20] sm:$0xff]
        %v1404 = vld [vmem:[%s5 + $0x28] sm:$0xff]
        %v1405 = vld [vmem:[%s5 + $0x30] sm:$0xff]
        %v1406 = vld [vmem:[%s5 + $0x38] sm:$0xff]
        %v1407 = vld [vmem:[%s5 + $0x40] sm:$0xff]
        %v1408 = vld [vmem:[%s5 + $0x48] sm:$0xff]
        %v1409 = vld [vmem:[%s5 + $0x50] sm:$0xff]
        %v1410 = vld [vmem:[%s5 + $0x58] sm:$0xff]
        %v1411 = vld [vmem:[%s5 + $0x60] sm:$0xff]
        %v1412 = vld [vmem:[%s5 + $0x68] sm:$0xff]
        %v1413 = vld [vmem:[%s5 + $0x70] sm:$0xff]
        %v1414 = vld [vmem:[%s5 + $0x78] sm:$0xff]
        %v1415 = vlaneseq
        %v1416 = vshrl.u32 %v1415, 7
        %v1417 = vsub.s32 0, %v1416
        %v1418 = vrot.slane %v1398, %v1417
        %1419 = vmatprep.subr.mxu0 0.0
        %1420 = vmatpush1.msra.mxu0 %v1399
        %1421 = vmatprep.subr.mxu0 0.0
        %1422 = vmatpush1.msra.mxu0 %v1400
        %1423 = vmatprep.subr.mxu0 0.0
        %1424 = vmatpush1.msra.mxu0 %v1401
        %1425 = vmatprep.subr.mxu0 0.0
        %1426 = vmatpush1.msra.mxu0 %v1402
        %1427 = vmatprep.subr.mxu0 0.0
        %1428 = vmatpush1.msra.mxu0 %v1403
        %1429 = vmatprep.subr.mxu0 0.0
        %1430 = vmatpush1.msra.mxu0 %v1404
        %1431 = vmatprep.subr.mxu0 0.0
        %1432 = vmatpush1.msra.mxu0 %v1405
        %1433 = vmatprep.subr.mxu0 0.0
        %1434 = vmatpush1.msra.mxu0 %v1406
        %1435 = vmatprep.subr.mxu0 0.0
        %1436 = vmatpush1.msra.mxu0 %v1407
        %1437 = vmatprep.subr.mxu0 0.0
        %1438 = vmatpush1.msra.mxu0 %v1408
        %1439 = vmatprep.subr.mxu0 0.0
        %1440 = vmatpush1.msra.mxu0 %v1409
        %1441 = vmatprep.subr.mxu0 0.0
        %1442 = vmatpush1.msra.mxu0 %v1410
        %1443 = vmatprep.subr.mxu0 0.0
        %1444 = vmatpush1.msra.mxu0 %v1411
        %1445 = vmatprep.subr.mxu0 0.0
        %1446 = vmatpush1.msra.mxu0 %v1412
        %1447 = vmatprep.subr.mxu0 0.0
        %1448 = vmatpush1.msra.mxu0 %v1413
        %1449 = vmatprep.subr.mxu0 0.0
        %1450 = vmatpush1.msra.mxu0 %v1414
        %1451 = vmatprep.subr.mxu0 0.0
        %1452 = vmatpush1.msra.mxu0 0.0
        %1453 = vmatprep.subr.mxu0 0.0
        %1454 = vmatpush1.msra.mxu0 0.0
        %1455 = vmatprep.subr.mxu0 0.0
        %1456 = vmatpush1.msra.mxu0 0.0
        %1457 = vmatprep.subr.mxu0 0.0
        %1458 = vmatpush1.msra.mxu0 0.0
        %1459 = vmatprep.subr.mxu0 0.0
        %1460 = vmatpush1.msra.mxu0 0.0
        %1461 = vmatprep.subr.mxu0 0.0
        %1462 = vmatpush1.msra.mxu0 0.0
        %1463 = vmatprep.subr.mxu0 0.0
        %1464 = vmatpush1.msra.mxu0 0.0
        %1465 = vmatprep.subr.mxu0 0.0
        %1466 = vmatpush1.msra.mxu0 0.0
        %1467 = vmatprep.subr.mxu0 0.0
        %1468 = vmatpush1.msra.mxu0 0.0
        %1469 = vmatprep.subr.mxu0 0.0
        %1470 = vmatpush1.msra.mxu0 0.0
        %1471 = vmatprep.subr.mxu0 0.0
        %1472 = vmatpush1.msra.mxu0 0.0
        %1473 = vmatprep.subr.mxu0 0.0
        %1474 = vmatpush1.msra.mxu0 0.0
        %1475 = vmatprep.subr.mxu0 0.0
        %1476 = vmatpush1.msra.mxu0 0.0
        %1477 = vmatprep.subr.mxu0 0.0
        %1478 = vmatpush1.msra.mxu0 0.0
        %1479 = vmatprep.subr.mxu0 0.0
        %1480 = vmatpush1.msra.mxu0 0.0
        %1481 = vmatprep.subr.mxu0 0.0
        %1482 = vmatpush1.msra.mxu0 0.0
        %1483 = vmatprep.mubr.f32.mxu0 0.0
        %1484 = vmatmul.mubr.f32.gmra.mrb[0].mxu0 %v1366
        %v1485 = vpop.f32.mrb[0].mxu0
        %v1486 = vadd.f32 %v1418, %v1485
        %v1487 = vpop.f32.mrb[0].mxu0
        %1488 = vmatprep.mubr.f32.mxu0 0.0
        %1489 = vmatmul.mubr.f32.gmra.mrb[0].mxu0 %v1367
        %v1490 = vpop.f32.mrb[0].mxu0
        %v1491 = vadd.f32 %v1418, %v1490
        %v1492 = vpop.f32.mrb[0].mxu0
        %1493 = vmatprep.mubr.f32.mxu0 0.0
        %1494 = vmatmul.mubr.f32.gmra.mrb[0].mxu0 %v1368
        %v1495 = vpop.f32.mrb[0].mxu0
        %v1496 = vadd.f32 %v1418, %v1495
        %v1497 = vpop.f32.mrb[0].mxu0
        %1498 = vmatprep.mubr.f32.mxu0 0.0
        %1499 = vmatmul.mubr.f32.gmra.mrb[0].mxu0 %v1369
        %v1500 = vpop.f32.mrb[0].mxu0
        %v1501 = vadd.f32 %v1418, %v1500
        %v1502 = vpop.f32.mrb[0].mxu0
        %1503 = vmatprep.mubr.f32.mxu0 0.0
        %1504 = vmatmul.mubr.f32.gmra.mrb[0].mxu0 %v1370
        %v1505 = vpop.f32.mrb[0].mxu0
        %v1506 = vadd.f32 %v1418, %v1505
        %v1507 = vpop.f32.mrb[0].mxu0
        %1508 = vmatprep.mubr.f32.mxu0 0.0
        %1509 = vmatmul.mubr.f32.gmra.mrb[0].mxu0 %v1371
        %v1510 = vpop.f32.mrb[0].mxu0
        %v1511 = vadd.f32 %v1418, %v1510
        %v1512 = vpop.f32.mrb[0].mxu0
        %1513 = vmatprep.mubr.f32.mxu0 0.0
        %1514 = vmatmul.mubr.f32.gmra.mrb[0].mxu0 %v1372
        %v1515 = vpop.f32.mrb[0].mxu0
        %v1516 = vadd.f32 %v1418, %v1515
        %v1517 = vpop.f32.mrb[0].mxu0
        %1518 = vmatprep.mubr.f32.mxu0 0.0
        %1519 = vmatmul.mubr.f32.gmra.mrb[0].mxu0 %v1373
        %v1520 = vpop.f32.mrb[0].mxu0
        %v1521 = vadd.f32 %v1418, %v1520
        %v1522 = vpop.f32.mrb[0].mxu0
        %1523 = vmatprep.mubr.f32.mxu0 0.0
        %1524 = vmatmul.mubr.f32.gmra.mrb[0].mxu0 %v1374
        %v1525 = vpop.f32.mrb[0].mxu0
        %v1526 = vadd.f32 %v1418, %v1525
        %v1527 = vpop.f32.mrb[0].mxu0
        %1528 = vmatprep.mubr.f32.mxu0 0.0
        %1529 = vmatmul.mubr.f32.gmra.mrb[0].mxu0 %v1375
        %v1530 = vpop.f32.mrb[0].mxu0
        %v1531 = vadd.f32 %v1418, %v1530
        %v1532 = vpop.f32.mrb[0].mxu0
        %1533 = vmatprep.mubr.f32.mxu0 0.0
        %1534 = vmatmul.mubr.f32.gmra.mrb[0].mxu0 %v1376
        %v1535 = vpop.f32.mrb[0].mxu0
        %v1536 = vadd.f32 %v1418, %v1535
        %v1537 = vpop.f32.mrb[0].mxu0
        %1538 = vmatprep.mubr.f32.mxu0 0.0
        %1539 = vmatmul.mubr.f32.gmra.mrb[0].mxu0 %v1377
        %v1540 = vpop.f32.mrb[0].mxu0
        %v1541 = vadd.f32 %v1418, %v1540
        %v1542 = vpop.f32.mrb[0].mxu0
        %1543 = vmatprep.mubr.f32.mxu0 0.0
        %1544 = vmatmul.mubr.f32.gmra.mrb[0].mxu0 %v1378
        %v1545 = vpop.f32.mrb[0].mxu0
        %v1546 = vadd.f32 %v1418, %v1545
        %v1547 = vpop.f32.mrb[0].mxu0
        %1548 = vmatprep.mubr.f32.mxu0 0.0
        %1549 = vmatmul.mubr.f32.gmra.mrb[0].mxu0 %v1379
        %v1550 = vpop.f32.mrb[0].mxu0
        %v1551 = vadd.f32 %v1418, %v1550
        %v1552 = vpop.f32.mrb[0].mxu0
        %1553 = vmatprep.mubr.f32.mxu0 0.0
        %1554 = vmatmul.mubr.f32.gmra.mrb[0].mxu0 %v1380
        %v1555 = vpop.f32.mrb[0].mxu0
        %v1556 = vadd.f32 %v1418, %v1555
        %v1557 = vpop.f32.mrb[0].mxu0
        %1558 = vmatprep.mubr.f32.mxu0 0.0
        %1559 = vmatmul.mubr.f32.gmra.mrb[0].mxu0 %v1381
        %v1560 = vpop.f32.mrb[0].mxu0
        %v1561 = vadd.f32 %v1418, %v1560
        %v1562 = vpop.f32.mrb[0].mxu0
        %1563 = vmatprep.mubr.f32.mxu0 0.0
        %1564 = vmatmul.mubr.f32.gmra.mrb[0].mxu0 %v1382
        %v1565 = vpop.f32.mrb[0].mxu0
        %v1566 = vadd.f32 %v1418, %v1565
        %v1567 = vpop.f32.mrb[0].mxu0
        %1568 = vmatprep.mubr.f32.mxu0 0.0
        %1569 = vmatmul.mubr.f32.gmra.mrb[0].mxu0 %v1383
        %v1570 = vpop.f32.mrb[0].mxu0
        %v1571 = vadd.f32 %v1418, %v1570
        %v1572 = vpop.f32.mrb[0].mxu0
        %1573 = vmatprep.mubr.f32.mxu0 0.0
        %1574 = vmatmul.mubr.f32.gmra.mrb[0].mxu0 %v1384
        %v1575 = vpop.f32.mrb[0].mxu0
        %v1576 = vadd.f32 %v1418, %v1575
        %v1577 = vpop.f32.mrb[0].mxu0
        %1578 = vmatprep.mubr.f32.mxu0 0.0
        %1579 = vmatmul.mubr.f32.gmra.mrb[0].mxu0 %v1385
        %v1580 = vpop.f32.mrb[0].mxu0
        %v1581 = vadd.f32 %v1418, %v1580
        %v1582 = vpop.f32.mrb[0].mxu0
        %1583 = vmatprep.mubr.f32.mxu0 0.0
        %1584 = vmatmul.mubr.f32.gmra.mrb[0].mxu0 %v1386
        %v1585 = vpop.f32.mrb[0].mxu0
        %v1586 = vadd.f32 %v1418, %v1585
        %v1587 = vpop.f32.mrb[0].mxu0
        %1588 = vmatprep.mubr.f32.mxu0 0.0
        %1589 = vmatmul.mubr.f32.gmra.mrb[0].mxu0 %v1387
        %v1590 = vpop.f32.mrb[0].mxu0
        %v1591 = vadd.f32 %v1418, %v1590
        %v1592 = vpop.f32.mrb[0].mxu0
        %1593 = vmatprep.mubr.f32.mxu0 0.0
        %1594 = vmatmul.mubr.f32.gmra.mrb[0].mxu0 %v1388
        %v1595 = vpop.f32.mrb[0].mxu0
        %v1596 = vadd.f32 %v1418, %v1595
        %v1597 = vpop.f32.mrb[0].mxu0
        %1598 = vmatprep.mubr.f32.mxu0 0.0
        %1599 = vmatmul.mubr.f32.gmra.mrb[0].mxu0 %v1389
        %v1600 = vpop.f32.mrb[0].mxu0
        %v1601 = vadd.f32 %v1418, %v1600
        %v1602 = vpop.f32.mrb[0].mxu0
        %1603 = vmatprep.mubr.f32.mxu0 0.0
        %1604 = vmatmul.mubr.f32.gmra.mrb[0].mxu0 %v1390
        %v1605 = vpop.f32.mrb[0].mxu0
        %v1606 = vadd.f32 %v1418, %v1605
        %v1607 = vpop.f32.mrb[0].mxu0
        %1608 = vmatprep.mubr.f32.mxu0 0.0
        %1609 = vmatmul.mubr.f32.gmra.mrb[0].mxu0 %v1391
        %v1610 = vpop.f32.mrb[0].mxu0
        %v1611 = vadd.f32 %v1418, %v1610
        %v1612 = vpop.f32.mrb[0].mxu0
        %1613 = vmatprep.mubr.f32.mxu0 0.0
        %1614 = vmatmul.mubr.f32.gmra.mrb[0].mxu0 %v1392
        %v1615 = vpop.f32.mrb[0].mxu0
        %v1616 = vadd.f32 %v1418, %v1615
        %v1617 = vpop.f32.mrb[0].mxu0
        %1618 = vmatprep.mubr.f32.mxu0 0.0
        %1619 = vmatmul.mubr.f32.gmra.mrb[0].mxu0 %v1393
        %v1620 = vpop.f32.mrb[0].mxu0
        %v1621 = vadd.f32 %v1418, %v1620
        %v1622 = vpop.f32.mrb[0].mxu0
        %1623 = vmatprep.mubr.f32.mxu0 0.0
        %1624 = vmatmul.mubr.f32.gmra.mrb[0].mxu0 %v1394
        %v1625 = vpop.f32.mrb[0].mxu0
        %v1626 = vadd.f32 %v1418, %v1625
        %v1627 = vpop.f32.mrb[0].mxu0
        %1628 = vmatprep.mubr.f32.mxu0 0.0
        %1629 = vmatmul.mubr.f32.gmra.mrb[0].mxu0 %v1395
        %v1630 = vpop.f32.mrb[0].mxu0
        %v1631 = vadd.f32 %v1418, %v1630
        %v1632 = vpop.f32.mrb[0].mxu0
        %1633 = vmatprep.mubr.f32.mxu0 0.0
        %1634 = vmatmul.mubr.f32.gmra.mrb[0].mxu0 %v1396
        %v1635 = vpop.f32.mrb[0].mxu0
        %v1636 = vadd.f32 %v1418, %v1635
        %v1637 = vpop.f32.mrb[0].mxu0
        %1638 = vmatprep.mubr.f32.mxu0 0.0
        %1639 = vmatmul.mubr.f32.gmra.mrb[0].mxu0 %v1397
        %v1640 = vpop.f32.mrb[0].mxu0
        %v1641 = vadd.f32 %v1418, %v1640
        %v1642 = vpop.f32.mrb[0].mxu0
        %1643 = vdwg.mxu0
        %v1644 = vmax.f32 %v1486, 0.0
        %v1645 = vmax.f32 %v1491, 0.0
        %v1646 = vmax.f32 %v1496, 0.0
        %v1647 = vmax.f32 %v1501, 0.0
        %v1648 = vmax.f32 %v1506, 0.0
        %v1649 = vmax.f32 %v1511, 0.0
        %v1650 = vmax.f32 %v1516, 0.0
        %v1651 = vmax.f32 %v1521, 0.0
        %v1652 = vmax.f32 %v1526, 0.0
        %v1653 = vmax.f32 %v1531, 0.0
        %v1654 = vmax.f32 %v1536, 0.0
        %v1655 = vmax.f32 %v1541, 0.0
        %v1656 = vmax.f32 %v1546, 0.0
        %v1657 = vmax.f32 %v1551, 0.0
        %v1658 = vmax.f32 %v1556, 0.0
        %v1659 = vmax.f32 %v1561, 0.0
        %v1660 = vmax.f32 %v1566, 0.0
        %v1661 = vmax.f32 %v1571, 0.0
        %v1662 = vmax.f32 %v1576, 0.0
        %v1663 = vmax.f32 %v1581, 0.0
        %v1664 = vmax.f32 %v1586, 0.0
        %v1665 = vmax.f32 %v1591, 0.0
        %v1666 = vmax.f32 %v1596, 0.0
        %v1667 = vmax.f32 %v1601, 0.0
        %v1668 = vmax.f32 %v1606, 0.0
        %v1669 = vmax.f32 %v1611, 0.0
        %v1670 = vmax.f32 %v1616, 0.0
        %v1671 = vmax.f32 %v1621, 0.0
        %v1672 = vmax.f32 %v1626, 0.0
        %v1673 = vmax.f32 %v1631, 0.0
        %v1674 = vmax.f32 %v1636, 0.0
        %v1675 = vmax.f32 %v1641, 0.0
        %v1676 = vlaneseq
        %v1677 = vshrl.u32 %v1676, 7
        %v1678 = vsub.s32 1, %v1677
        %v1679 = vrot.slane %v1398, %v1678
        %v1680 = vmul.f32 %v1644, %v1679
        %v1681 = vmul.f32 %v1645, %v1679
        %v1682 = vmul.f32 %v1646, %v1679
        %v1683 = vmul.f32 %v1647, %v1679
        %v1684 = vmul.f32 %v1648, %v1679
        %v1685 = vmul.f32 %v1649, %v1679
        %v1686 = vmul.f32 %v1650, %v1679
        %v1687 = vmul.f32 %v1651, %v1679
        %v1688 = vmul.f32 %v1652, %v1679
        %v1689 = vmul.f32 %v1653, %v1679
        %v1690 = vmul.f32 %v1654, %v1679
        %v1691 = vmul.f32 %v1655, %v1679
        %v1692 = vmul.f32 %v1656, %v1679
        %v1693 = vmul.f32 %v1657, %v1679
        %v1694 = vmul.f32 %v1658, %v1679
        %v1695 = vmul.f32 %v1659, %v1679
        %v1696 = vmul.f32 %v1660, %v1679
        %v1697 = vmul.f32 %v1661, %v1679
        %v1698 = vmul.f32 %v1662, %v1679
        %v1699 = vmul.f32 %v1663, %v1679
        %v1700 = vmul.f32 %v1664, %v1679
        %v1701 = vmul.f32 %v1665, %v1679
        %v1702 = vmul.f32 %v1666, %v1679
        %v1703 = vmul.f32 %v1667, %v1679
        %v1704 = vmul.f32 %v1668, %v1679
        %v1705 = vmul.f32 %v1669, %v1679
        %v1706 = vmul.f32 %v1670, %v1679
        %v1707 = vmul.f32 %v1671, %v1679
        %v1708 = vmul.f32 %v1672, %v1679
        %v1709 = vmul.f32 %v1673, %v1679
        %v1710 = vmul.f32 %v1674, %v1679
        %v1711 = vmul.f32 %v1675, %v1679
        %v1712 = vlaneseq
        %v1713 = vshrl.u32 %v1712, 7
        %v1714 = vsub.s32 2, %v1713
        %v1715 = vrot.slane %v1398, %v1714
        %v1716 = vadd.f32 %v1680, %v1715
        %v1717 = vadd.f32 %v1681, %v1715
        %v1718 = vadd.f32 %v1682, %v1715
        %v1719 = vadd.f32 %v1683, %v1715
        %v1720 = vadd.f32 %v1684, %v1715
        %v1721 = vadd.f32 %v1685, %v1715
        %v1722 = vadd.f32 %v1686, %v1715
        %v1723 = vadd.f32 %v1687, %v1715
        %v1724 = vadd.f32 %v1688, %v1715
        %v1725 = vadd.f32 %v1689, %v1715
        %v1726 = vadd.f32 %v1690, %v1715
        %v1727 = vadd.f32 %v1691, %v1715
        %v1728 = vadd.f32 %v1692, %v1715
        %v1729 = vadd.f32 %v1693, %v1715
        %v1730 = vadd.f32 %v1694, %v1715
        %v1731 = vadd.f32 %v1695, %v1715
        %v1732 = vadd.f32 %v1696, %v1715
        %v1733 = vadd.f32 %v1697, %v1715
        %v1734 = vadd.f32 %v1698, %v1715
        %v1735 = vadd.f32 %v1699, %v1715
        %v1736 = vadd.f32 %v1700, %v1715
        %v1737 = vadd.f32 %v1701, %v1715
        %v1738 = vadd.f32 %v1702, %v1715
        %v1739 = vadd.f32 %v1703, %v1715
        %v1740 = vadd.f32 %v1704, %v1715
        %v1741 = vadd.f32 %v1705, %v1715
        %v1742 = vadd.f32 %v1706, %v1715
        %v1743 = vadd.f32 %v1707, %v1715
        %v1744 = vadd.f32 %v1708, %v1715
        %v1745 = vadd.f32 %v1709, %v1715
        %v1746 = vadd.f32 %v1710, %v1715
        %v1747 = vadd.f32 %v1711, %v1715
        %v1748 = vld [vmem:[%s8] sm:$0x7]
        %v1749 = vld [vmem:[%s7] sm:$0xff]
        %v1750 = vld [vmem:[%s7 + $0x8] sm:$0xff]
        %v1751 = vld [vmem:[%s7 + $0x10] sm:$0xff]
        %v1752 = vld [vmem:[%s7 + $0x18] sm:$0xff]
        %v1753 = vld [vmem:[%s7 + $0x20] sm:$0xff]
        %v1754 = vld [vmem:[%s7 + $0x28] sm:$0xff]
        %v1755 = vld [vmem:[%s7 + $0x30] sm:$0xff]
        %v1756 = vld [vmem:[%s7 + $0x38] sm:$0xff]
        %v1757 = vld [vmem:[%s7 + $0x40] sm:$0xff]
        %v1758 = vld [vmem:[%s7 + $0x48] sm:$0xff]
        %v1759 = vld [vmem:[%s7 + $0x50] sm:$0xff]
        %v1760 = vld [vmem:[%s7 + $0x58] sm:$0xff]
        %v1761 = vld [vmem:[%s7 + $0x60] sm:$0xff]
        %v1762 = vld [vmem:[%s7 + $0x68] sm:$0xff]
        %v1763 = vld [vmem:[%s7 + $0x70] sm:$0xff]
        %v1764 = vld [vmem:[%s7 + $0x78] sm:$0xff]
        %v1765 = vlaneseq
        %v1766 = vshrl.u32 %v1765, 7
        %v1767 = vsub.s32 0, %v1766
        %v1768 = vrot.slane %v1748, %v1767
        %1769 = vmatprep.subr.mxu0 0.0
        %1770 = vmatpush1.msra.mxu0 %v1749
        %1771 = vmatprep.subr.mxu0 0.0
        %1772 = vmatpush1.msra.mxu0 %v1750
        %1773 = vmatprep.subr.mxu0 0.0
        %1774 = vmatpush1.msra.mxu0 %v1751
        %1775 = vmatprep.subr.mxu0 0.0
        %1776 = vmatpush1.msra.mxu0 %v1752
        %1777 = vmatprep.subr.mxu0 0.0
        %1778 = vmatpush1.msra.mxu0 %v1753
        %1779 = vmatprep.subr.mxu0 0.0
        %1780 = vmatpush1.msra.mxu0 %v1754
        %1781 = vmatprep.subr.mxu0 0.0
        %1782 = vmatpush1.msra.mxu0 %v1755
        %1783 = vmatprep.subr.mxu0 0.0
        %1784 = vmatpush1.msra.mxu0 %v1756
        %1785 = vmatprep.subr.mxu0 0.0
        %1786 = vmatpush1.msra.mxu0 %v1757
        %1787 = vmatprep.subr.mxu0 0.0
        %1788 = vmatpush1.msra.mxu0 %v1758
        %1789 = vmatprep.subr.mxu0 0.0
        %1790 = vmatpush1.msra.mxu0 %v1759
        %1791 = vmatprep.subr.mxu0 0.0
        %1792 = vmatpush1.msra.mxu0 %v1760
        %1793 = vmatprep.subr.mxu0 0.0
        %1794 = vmatpush1.msra.mxu0 %v1761
        %1795 = vmatprep.subr.mxu0 0.0
        %1796 = vmatpush1.msra.mxu0 %v1762
        %1797 = vmatprep.subr.mxu0 0.0
        %1798 = vmatpush1.msra.mxu0 %v1763
        %1799 = vmatprep.subr.mxu0 0.0
        %1800 = vmatpush1.msra.mxu0 %v1764
        %1801 = vmatprep.subr.mxu0 0.0
        %1802 = vmatpush1.msra.mxu0 0.0
        %1803 = vmatprep.subr.mxu0 0.0
        %1804 = vmatpush1.msra.mxu0 0.0
        %1805 = vmatprep.subr.mxu0 0.0
        %1806 = vmatpush1.msra.mxu0 0.0
        %1807 = vmatprep.subr.mxu0 0.0
        %1808 = vmatpush1.msra.mxu0 0.0
        %1809 = vmatprep.subr.mxu0 0.0
        %1810 = vmatpush1.msra.mxu0 0.0
        %1811 = vmatprep.subr.mxu0 0.0
        %1812 = vmatpush1.msra.mxu0 0.0
        %1813 = vmatprep.subr.mxu0 0.0
        %1814 = vmatpush1.msra.mxu0 0.0
        %1815 = vmatprep.subr.mxu0 0.0
        %1816 = vmatpush1.msra.mxu0 0.0
        %1817 = vmatprep.subr.mxu0 0.0
        %1818 = vmatpush1.msra.mxu0 0.0
        %1819 = vmatprep.subr.mxu0 0.0
        %1820 = vmatpush1.msra.mxu0 0.0
        %1821 = vmatprep.subr.mxu0 0.0
        %1822 = vmatpush1.msra.mxu0 0.0
        %1823 = vmatprep.subr.mxu0 0.0
        %1824 = vmatpush1.msra.mxu0 0.0
        %1825 = vmatprep.subr.mxu0 0.0
        %1826 = vmatpush1.msra.mxu0 0.0
        %1827 = vmatprep.subr.mxu0 0.0
        %1828 = vmatpush1.msra.mxu0 0.0
        %1829 = vmatprep.subr.mxu0 0.0
        %1830 = vmatpush1.msra.mxu0 0.0
        %1831 = vmatprep.subr.mxu0 0.0
        %1832 = vmatpush1.msra.mxu0 0.0
        %1833 = vmatprep.mubr.f32.mxu0 0.0
        %1834 = vmatmul.mubr.f32.gmra.mrb[0].mxu0 %v1716
        %v1835 = vpop.f32.mrb[0].mxu0
        %v1836 = vadd.f32 %v1768, %v1835
        %v1837 = vpop.f32.mrb[0].mxu0
        %1838 = vmatprep.mubr.f32.mxu0 0.0
        %1839 = vmatmul.mubr.f32.gmra.mrb[0].mxu0 %v1717
        %v1840 = vpop.f32.mrb[0].mxu0
        %v1841 = vadd.f32 %v1768, %v1840
        %v1842 = vpop.f32.mrb[0].mxu0
        %1843 = vmatprep.mubr.f32.mxu0 0.0
        %1844 = vmatmul.mubr.f32.gmra.mrb[0].mxu0 %v1718
        %v1845 = vpop.f32.mrb[0].mxu0
        %v1846 = vadd.f32 %v1768, %v1845
        %v1847 = vpop.f32.mrb[0].mxu0
        %1848 = vmatprep.mubr.f32.mxu0 0.0
        %1849 = vmatmul.mubr.f32.gmra.mrb[0].mxu0 %v1719
        %v1850 = vpop.f32.mrb[0].mxu0
        %v1851 = vadd.f32 %v1768, %v1850
        %v1852 = vpop.f32.mrb[0].mxu0
        %1853 = vmatprep.mubr.f32.mxu0 0.0
        %1854 = vmatmul.mubr.f32.gmra.mrb[0].mxu0 %v1720
        %v1855 = vpop.f32.mrb[0].mxu0
        %v1856 = vadd.f32 %v1768, %v1855
        %v1857 = vpop.f32.mrb[0].mxu0
        %1858 = vmatprep.mubr.f32.mxu0 0.0
        %1859 = vmatmul.mubr.f32.gmra.mrb[0].mxu0 %v1721
        %v1860 = vpop.f32.mrb[0].mxu0
        %v1861 = vadd.f32 %v1768, %v1860
        %v1862 = vpop.f32.mrb[0].mxu0
        %1863 = vmatprep.mubr.f32.mxu0 0.0
        %1864 = vmatmul.mubr.f32.gmra.mrb[0].mxu0 %v1722
        %v1865 = vpop.f32.mrb[0].mxu0
        %v1866 = vadd.f32 %v1768, %v1865
        %v1867 = vpop.f32.mrb[0].mxu0
        %1868 = vmatprep.mubr.f32.mxu0 0.0
        %1869 = vmatmul.mubr.f32.gmra.mrb[0].mxu0 %v1723
        %v1870 = vpop.f32.mrb[0].mxu0
        %v1871 = vadd.f32 %v1768, %v1870
        %v1872 = vpop.f32.mrb[0].mxu0
        %1873 = vmatprep.mubr.f32.mxu0 0.0
        %1874 = vmatmul.mubr.f32.gmra.mrb[0].mxu0 %v1724
        %v1875 = vpop.f32.mrb[0].mxu0
        %v1876 = vadd.f32 %v1768, %v1875
        %v1877 = vpop.f32.mrb[0].mxu0
        %1878 = vmatprep.mubr.f32.mxu0 0.0
        %1879 = vmatmul.mubr.f32.gmra.mrb[0].mxu0 %v1725
        %v1880 = vpop.f32.mrb[0].mxu0
        %v1881 = vadd.f32 %v1768, %v1880
        %v1882 = vpop.f32.mrb[0].mxu0
        %1883 = vmatprep.mubr.f32.mxu0 0.0
        %1884 = vmatmul.mubr.f32.gmra.mrb[0].mxu0 %v1726
        %v1885 = vpop.f32.mrb[0].mxu0
        %v1886 = vadd.f32 %v1768, %v1885
        %v1887 = vpop.f32.mrb[0].mxu0
        %1888 = vmatprep.mubr.f32.mxu0 0.0
        %1889 = vmatmul.mubr.f32.gmra.mrb[0].mxu0 %v1727
        %v1890 = vpop.f32.mrb[0].mxu0
        %v1891 = vadd.f32 %v1768, %v1890
        %v1892 = vpop.f32.mrb[0].mxu0
        %1893 = vmatprep.mubr.f32.mxu0 0.0
        %1894 = vmatmul.mubr.f32.gmra.mrb[0].mxu0 %v1728
        %v1895 = vpop.f32.mrb[0].mxu0
        %v1896 = vadd.f32 %v1768, %v1895
        %v1897 = vpop.f32.mrb[0].mxu0
        %1898 = vmatprep.mubr.f32.mxu0 0.0
        %1899 = vmatmul.mubr.f32.gmra.mrb[0].mxu0 %v1729
        %v1900 = vpop.f32.mrb[0].mxu0
        %v1901 = vadd.f32 %v1768, %v1900
        %v1902 = vpop.f32.mrb[0].mxu0
        %1903 = vmatprep.mubr.f32.mxu0 0.0
        %1904 = vmatmul.mubr.f32.gmra.mrb[0].mxu0 %v1730
        %v1905 = vpop.f32.mrb[0].mxu0
        %v1906 = vadd.f32 %v1768, %v1905
        %v1907 = vpop.f32.mrb[0].mxu0
        %1908 = vmatprep.mubr.f32.mxu0 0.0
        %1909 = vmatmul.mubr.f32.gmra.mrb[0].mxu0 %v1731
        %v1910 = vpop.f32.mrb[0].mxu0
        %v1911 = vadd.f32 %v1768, %v1910
        %v1912 = vpop.f32.mrb[0].mxu0
        %1913 = vmatprep.mubr.f32.mxu0 0.0
        %1914 = vmatmul.mubr.f32.gmra.mrb[0].mxu0 %v1732
        %v1915 = vpop.f32.mrb[0].mxu0
        %v1916 = vadd.f32 %v1768, %v1915
        %v1917 = vpop.f32.mrb[0].mxu0
        %1918 = vmatprep.mubr.f32.mxu0 0.0
        %1919 = vmatmul.mubr.f32.gmra.mrb[0].mxu0 %v1733
        %v1920 = vpop.f32.mrb[0].mxu0
        %v1921 = vadd.f32 %v1768, %v1920
        %v1922 = vpop.f32.mrb[0].mxu0
        %1923 = vmatprep.mubr.f32.mxu0 0.0
        %1924 = vmatmul.mubr.f32.gmra.mrb[0].mxu0 %v1734
        %v1925 = vpop.f32.mrb[0].mxu0
        %v1926 = vadd.f32 %v1768, %v1925
        %v1927 = vpop.f32.mrb[0].mxu0
        %1928 = vmatprep.mubr.f32.mxu0 0.0
        %1929 = vmatmul.mubr.f32.gmra.mrb[0].mxu0 %v1735
        %v1930 = vpop.f32.mrb[0].mxu0
        %v1931 = vadd.f32 %v1768, %v1930
        %v1932 = vpop.f32.mrb[0].mxu0
        %1933 = vmatprep.mubr.f32.mxu0 0.0
        %1934 = vmatmul.mubr.f32.gmra.mrb[0].mxu0 %v1736
        %v1935 = vpop.f32.mrb[0].mxu0
        %v1936 = vadd.f32 %v1768, %v1935
        %v1937 = vpop.f32.mrb[0].mxu0
        %1938 = vmatprep.mubr.f32.mxu0 0.0
        %1939 = vmatmul.mubr.f32.gmra.mrb[0].mxu0 %v1737
        %v1940 = vpop.f32.mrb[0].mxu0
        %v1941 = vadd.f32 %v1768, %v1940
        %v1942 = vpop.f32.mrb[0].mxu0
        %1943 = vmatprep.mubr.f32.mxu0 0.0
        %1944 = vmatmul.mubr.f32.gmra.mrb[0].mxu0 %v1738
        %v1945 = vpop.f32.mrb[0].mxu0
        %v1946 = vadd.f32 %v1768, %v1945
        %v1947 = vpop.f32.mrb[0].mxu0
        %1948 = vmatprep.mubr.f32.mxu0 0.0
        %1949 = vmatmul.mubr.f32.gmra.mrb[0].mxu0 %v1739
        %v1950 = vpop.f32.mrb[0].mxu0
        %v1951 = vadd.f32 %v1768, %v1950
        %v1952 = vpop.f32.mrb[0].mxu0
        %1953 = vmatprep.mubr.f32.mxu0 0.0
        %1954 = vmatmul.mubr.f32.gmra.mrb[0].mxu0 %v1740
        %v1955 = vpop.f32.mrb[0].mxu0
        %v1956 = vadd.f32 %v1768, %v1955
        %v1957 = vpop.f32.mrb[0].mxu0
        %1958 = vmatprep.mubr.f32.mxu0 0.0
        %1959 = vmatmul.mubr.f32.gmra.mrb[0].mxu0 %v1741
        %v1960 = vpop.f32.mrb[0].mxu0
        %v1961 = vadd.f32 %v1768, %v1960
        %v1962 = vpop.f32.mrb[0].mxu0
        %1963 = vmatprep.mubr.f32.mxu0 0.0
        %1964 = vmatmul.mubr.f32.gmra.mrb[0].mxu0 %v1742
        %v1965 = vpop.f32.mrb[0].mxu0
        %v1966 = vadd.f32 %v1768, %v1965
        %v1967 = vpop.f32.mrb[0].mxu0
        %1968 = vmatprep.mubr.f32.mxu0 0.0
        %1969 = vmatmul.mubr.f32.gmra.mrb[0].mxu0 %v1743
        %v1970 = vpop.f32.mrb[0].mxu0
        %v1971 = vadd.f32 %v1768, %v1970
        %v1972 = vpop.f32.mrb[0].mxu0
        %1973 = vmatprep.mubr.f32.mxu0 0.0
        %1974 = vmatmul.mubr.f32.gmra.mrb[0].mxu0 %v1744
        %v1975 = vpop.f32.mrb[0].mxu0
        %v1976 = vadd.f32 %v1768, %v1975
        %v1977 = vpop.f32.mrb[0].mxu0
        %1978 = vmatprep.mubr.f32.mxu0 0.0
        %1979 = vmatmul.mubr.f32.gmra.mrb[0].mxu0 %v1745
        %v1980 = vpop.f32.mrb[0].mxu0
        %v1981 = vadd.f32 %v1768, %v1980
        %v1982 = vpop.f32.mrb[0].mxu0
        %1983 = vmatprep.mubr.f32.mxu0 0.0
        %1984 = vmatmul.mubr.f32.gmra.mrb[0].mxu0 %v1746
        %v1985 = vpop.f32.mrb[0].mxu0
        %v1986 = vadd.f32 %v1768, %v1985
        %v1987 = vpop.f32.mrb[0].mxu0
        %1988 = vmatprep.mubr.f32.mxu0 0.0
        %1989 = vmatmul.mubr.f32.gmra.mrb[0].mxu0 %v1747
        %v1990 = vpop.f32.mrb[0].mxu0
        %v1991 = vadd.f32 %v1768, %v1990
        %v1992 = vpop.f32.mrb[0].mxu0
        %1993 = vdwg.mxu0
        %v1994 = vmax.f32 %v1836, 0.0
        %v1995 = vmax.f32 %v1841, 0.0
        %v1996 = vmax.f32 %v1846, 0.0
        %v1997 = vmax.f32 %v1851, 0.0
        %v1998 = vmax.f32 %v1856, 0.0
        %v1999 = vmax.f32 %v1861, 0.0
        %v2000 = vmax.f32 %v1866, 0.0
        %v2001 = vmax.f32 %v1871, 0.0
        %v2002 = vmax.f32 %v1876, 0.0
        %v2003 = vmax.f32 %v1881, 0.0
        %v2004 = vmax.f32 %v1886, 0.0
        %v2005 = vmax.f32 %v1891, 0.0
        %v2006 = vmax.f32 %v1896, 0.0
        %v2007 = vmax.f32 %v1901, 0.0
        %v2008 = vmax.f32 %v1906, 0.0
        %v2009 = vmax.f32 %v1911, 0.0
        %v2010 = vmax.f32 %v1916, 0.0
        %v2011 = vmax.f32 %v1921, 0.0
        %v2012 = vmax.f32 %v1926, 0.0
        %v2013 = vmax.f32 %v1931, 0.0
        %v2014 = vmax.f32 %v1936, 0.0
        %v2015 = vmax.f32 %v1941, 0.0
        %v2016 = vmax.f32 %v1946, 0.0
        %v2017 = vmax.f32 %v1951, 0.0
        %v2018 = vmax.f32 %v1956, 0.0
        %v2019 = vmax.f32 %v1961, 0.0
        %v2020 = vmax.f32 %v1966, 0.0
        %v2021 = vmax.f32 %v1971, 0.0
        %v2022 = vmax.f32 %v1976, 0.0
        %v2023 = vmax.f32 %v1981, 0.0
        %v2024 = vmax.f32 %v1986, 0.0
        %v2025 = vmax.f32 %v1991, 0.0
        %v2026 = vlaneseq
        %v2027 = vshrl.u32 %v2026, 7
        %v2028 = vsub.s32 1, %v2027
        %v2029 = vrot.slane %v1748, %v2028
        %v2030 = vmul.f32 %v1994, %v2029
        %v2031 = vmul.f32 %v1995, %v2029
        %v2032 = vmul.f32 %v1996, %v2029
        %v2033 = vmul.f32 %v1997, %v2029
        %v2034 = vmul.f32 %v1998, %v2029
        %v2035 = vmul.f32 %v1999, %v2029
        %v2036 = vmul.f32 %v2000, %v2029
        %v2037 = vmul.f32 %v2001, %v2029
        %v2038 = vmul.f32 %v2002, %v2029
        %v2039 = vmul.f32 %v2003, %v2029
        %v2040 = vmul.f32 %v2004, %v2029
        %v2041 = vmul.f32 %v2005, %v2029
        %v2042 = vmul.f32 %v2006, %v2029
        %v2043 = vmul.f32 %v2007, %v2029
        %v2044 = vmul.f32 %v2008, %v2029
        %v2045 = vmul.f32 %v2009, %v2029
        %v2046 = vmul.f32 %v2010, %v2029
        %v2047 = vmul.f32 %v2011, %v2029
        %v2048 = vmul.f32 %v2012, %v2029
        %v2049 = vmul.f32 %v2013, %v2029
        %v2050 = vmul.f32 %v2014, %v2029
        %v2051 = vmul.f32 %v2015, %v2029
        %v2052 = vmul.f32 %v2016, %v2029
        %v2053 = vmul.f32 %v2017, %v2029
        %v2054 = vmul.f32 %v2018, %v2029
        %v2055 = vmul.f32 %v2019, %v2029
        %v2056 = vmul.f32 %v2020, %v2029
        %v2057 = vmul.f32 %v2021, %v2029
        %v2058 = vmul.f32 %v2022, %v2029
        %v2059 = vmul.f32 %v2023, %v2029
        %v2060 = vmul.f32 %v2024, %v2029
        %v2061 = vmul.f32 %v2025, %v2029
        %v2062 = vlaneseq
        %v2063 = vshrl.u32 %v2062, 7
        %v2064 = vsub.s32 2, %v2063
        %v2065 = vrot.slane %v1748, %v2064
        %v2066 = vadd.f32 %v2030, %v2065
        %v2067 = vadd.f32 %v2031, %v2065
        %v2068 = vadd.f32 %v2032, %v2065
        %v2069 = vadd.f32 %v2033, %v2065
        %v2070 = vadd.f32 %v2034, %v2065
        %v2071 = vadd.f32 %v2035, %v2065
        %v2072 = vadd.f32 %v2036, %v2065
        %v2073 = vadd.f32 %v2037, %v2065
        %v2074 = vadd.f32 %v2038, %v2065
        %v2075 = vadd.f32 %v2039, %v2065
        %v2076 = vadd.f32 %v2040, %v2065
        %v2077 = vadd.f32 %v2041, %v2065
        %v2078 = vadd.f32 %v2042, %v2065
        %v2079 = vadd.f32 %v2043, %v2065
        %v2080 = vadd.f32 %v2044, %v2065
        %v2081 = vadd.f32 %v2045, %v2065
        %v2082 = vadd.f32 %v2046, %v2065
        %v2083 = vadd.f32 %v2047, %v2065
        %v2084 = vadd.f32 %v2048, %v2065
        %v2085 = vadd.f32 %v2049, %v2065
        %v2086 = vadd.f32 %v2050, %v2065
        %v2087 = vadd.f32 %v2051, %v2065
        %v2088 = vadd.f32 %v2052, %v2065
        %v2089 = vadd.f32 %v2053, %v2065
        %v2090 = vadd.f32 %v2054, %v2065
        %v2091 = vadd.f32 %v2055, %v2065
        %v2092 = vadd.f32 %v2056, %v2065
        %v2093 = vadd.f32 %v2057, %v2065
        %v2094 = vadd.f32 %v2058, %v2065
        %v2095 = vadd.f32 %v2059, %v2065
        %v2096 = vadd.f32 %v2060, %v2065
        %v2097 = vadd.f32 %v2061, %v2065
        %v2098 = vld [vmem:[%s9] sm:$0x1]
        %v2099 = vld [vmem:[#allocation2] sm:$0x1]
        %2101 = vset.pattern.permute.xlu0 0
        %2102 = vperm.xlu0 %2101, %v2099
        %v2103 = vpop.permute.xlu0 %2102
        %v2105 = vlaneseq
        %v2106 = vshrl.u32 %v2105, 7
        %v2107 = vsub.s32 0, %v2106
        %v2108 = vrot.slane %v2103, %v2107
        %2109 = vmatprep.subr.mxu0 0.0
        %2110 = vmatpush1.xpose.msra.mxu0 %v2066
        %2111 = vmatprep.subr.mxu0 0.0
        %2112 = vmatpush1.xpose.msra.mxu0 %v2067
        %2113 = vmatprep.subr.mxu0 0.0
        %2114 = vmatpush1.xpose.msra.mxu0 %v2068
        %2115 = vmatprep.subr.mxu0 0.0
        %2116 = vmatpush1.xpose.msra.mxu0 %v2069
        %2117 = vmatprep.subr.mxu0 0.0
        %2118 = vmatpush1.xpose.msra.mxu0 %v2070
        %2119 = vmatprep.subr.mxu0 0.0
        %2120 = vmatpush1.xpose.msra.mxu0 %v2071
        %2121 = vmatprep.subr.mxu0 0.0
        %2122 = vmatpush1.xpose.msra.mxu0 %v2072
        %2123 = vmatprep.subr.mxu0 0.0
        %2124 = vmatpush1.xpose.msra.mxu0 %v2073
        %2125 = vmatprep.subr.mxu0 0.0
        %2126 = vmatpush1.xpose.msra.mxu0 %v2074
        %2127 = vmatprep.subr.mxu0 0.0
        %2128 = vmatpush1.xpose.msra.mxu0 %v2075
        %2129 = vmatprep.subr.mxu0 0.0
        %2130 = vmatpush1.xpose.msra.mxu0 %v2076
        %2131 = vmatprep.subr.mxu0 0.0
        %2132 = vmatpush1.xpose.msra.mxu0 %v2077
        %2133 = vmatprep.subr.mxu0 0.0
        %2134 = vmatpush1.xpose.msra.mxu0 %v2078
        %2135 = vmatprep.subr.mxu0 0.0
        %2136 = vmatpush1.xpose.msra.mxu0 %v2079
        %2137 = vmatprep.subr.mxu0 0.0
        %2138 = vmatpush1.xpose.msra.mxu0 %v2080
        %2139 = vmatprep.subr.mxu0 0.0
        %2140 = vmatpush1.xpose.msra.mxu0 %v2081
        %2141 = vmatprep.subr.mxu0 0.0
        %2142 = vmatpush1.xpose.msra.mxu0 %v2082
        %2143 = vmatprep.subr.mxu0 0.0
        %2144 = vmatpush1.xpose.msra.mxu0 %v2083
        %2145 = vmatprep.subr.mxu0 0.0
        %2146 = vmatpush1.xpose.msra.mxu0 %v2084
        %2147 = vmatprep.subr.mxu0 0.0
        %2148 = vmatpush1.xpose.msra.mxu0 %v2085
        %2149 = vmatprep.subr.mxu0 0.0
        %2150 = vmatpush1.xpose.msra.mxu0 %v2086
        %2151 = vmatprep.subr.mxu0 0.0
        %2152 = vmatpush1.xpose.msra.mxu0 %v2087
        %2153 = vmatprep.subr.mxu0 0.0
        %2154 = vmatpush1.xpose.msra.mxu0 %v2088
        %2155 = vmatprep.subr.mxu0 0.0
        %2156 = vmatpush1.xpose.msra.mxu0 %v2089
        %2157 = vmatprep.subr.mxu0 0.0
        %2158 = vmatpush1.xpose.msra.mxu0 %v2090
        %2159 = vmatprep.subr.mxu0 0.0
        %2160 = vmatpush1.xpose.msra.mxu0 %v2091
        %2161 = vmatprep.subr.mxu0 0.0
        %2162 = vmatpush1.xpose.msra.mxu0 %v2092
        %2163 = vmatprep.subr.mxu0 0.0
        %2164 = vmatpush1.xpose.msra.mxu0 %v2093
        %2165 = vmatprep.subr.mxu0 0.0
        %2166 = vmatpush1.xpose.msra.mxu0 %v2094
        %2167 = vmatprep.subr.mxu0 0.0
        %2168 = vmatpush1.xpose.msra.mxu0 %v2095
        %2169 = vmatprep.subr.mxu0 0.0
        %2170 = vmatpush1.xpose.msra.mxu0 %v2096
        %2171 = vmatprep.subr.mxu0 0.0
        %2172 = vmatpush1.xpose.msra.mxu0 %v2097
        %2173 = vmatprep.mubr.f32.mxu0 0.0
        %2174 = vmatmul.mubr.f32.gmra.mrb[0].mxu0 %v2098
        %v2175 = vpop.f32.mrb[0].mxu0
        %v2176 = vadd.f32 %v2108, %v2175
        %v2177 = vpop.f32.mrb[0].mxu0
        %v2178 = vadd.f32 %v2108, %v2177
        %2179 = vdwg.mxu0
        %v2180 = vsub.f32 0.0, %v2176
        %v2181 = vsub.f32 0.0, %v2178
        %v2182 = vmul.f32 %v2180, 1.442695
        %v2183 = vpow.pop %v2182
        %v2184 = vmul.f32 %v2181, 1.442695
        %v2185 = vpow.pop %v2184
        %v2186 = vadd.f32 %v2183, 1.0
        %v2187 = vadd.f32 %v2185, 1.0
        %v2188 = vrcp.pop %v2186
        %v2189 = vmul.f32 1.0, %v2188
        %v2190 = vrcp.pop %v2187
        %v2191 = vmul.f32 1.0, %v2190
        %v2194 = vcombine.low %v2189, %v2191
        %v2196 = vunpack.c.l.s4 1966171168
        %v2197 = vunpack.c.0.s8 %v2196
        %v2198 = vlaneseq
        %v2199 = vshrl.u32 %v2198, 7
        %v2200 = vsub.s32 %v2197, %v2199
        %v2201 = vrot.slane %v2194, %v2200
        %v2203 = vunpack.c.l.s4 1966171168
        %v2204 = vunpack.c.0.s8 %v2203
        %v2205 = vlaneseq
        %v2206 = vshrl.u32 %v2205, 7
        %v2207 = vsub.s32 %v2204, %v2206
        %v2208 = vrot.slane %v2201, %v2207
        %v2210 = vlaneseq
        %vm2211 = vcmp.ge.s32.totalorder %v2210, 0
        %vm2212 = vcmp.lt.s32.totalorder %v2210, 256
        %vm2213 = vmand %vm2211, %vm2212
        %2214 = vst.msk [vmem:[%s382] sm:$0x3] %vm2213, %v2208
        %s2215 = sand.u32 %s271, 1
        %s2216 = scalar_lea.sflag [#allocation4], %s2215
        %s2217 = sand.u32 %s271, 1
        %s2218 = smul.addr %s2217, 2
        %s2219 = scalar_lea.vmem [#allocation3], %s2218
        // Predicated region
        $region65: #{tpu_custom_call.1} parent=63 // pred_check
          %p2220 = pneg %p281
        $region66: #{tpu_custom_call.1} parent=63 // pred_check_branch
          %2222 = sbr.rel (%p2220) target = $region68
        $region67: #{tpu_custom_call.1} parent=63 // pred_region
          %s2223 = smul.u32 2, %s27
          %s2225 = ssub.s32 32, 32
          %2226 = vsyncadd %s2216, %s2225
          %s2227 = smul.addr %s2223, 16
          %s2228 = scalar_lea.hbm %s11, %s2227
          %s2230 = sshll.u32 %s2219, 4
          %s2231 = int_to_ptr.vmem [resolvable:$true] %s2230
          %2233 = dma.vmem_to_hbm [thread:$0]  %s2231, 32, %s2228, %s2216
        $region68: #{tpu_custom_call.1} parent=63 // pred_fallthru
          _
      $region64: #{tpu_custom_call.1} parent=5 // pred_fallthru
        _
      %p2234 = scmp.le.s32.totalorder 2, %s22
      // Predicated region
      $region69: #{tpu_custom_call.1} parent=5 // pred_check
        %p2235 = pneg %p2234
      $region70: #{tpu_custom_call.1} parent=5 // pred_check_branch
        %2237 = sbr.rel (%p2235) target = $region72
      $region71: #{tpu_custom_call.1} parent=5 // pred_region
        %s2238 = ssub.s32 %s22, 2
        // Predicated region
        $region73: #{tpu_custom_call.1} parent=71 // pred_check
          %p2239 = pneg %p287
        $region74: #{tpu_custom_call.1} parent=71 // pred_check_branch
          %2241 = sbr.rel (%p2239) target = $region76
        $region75: #{tpu_custom_call.1} parent=71 // pred_region
          %s2242 = sand.u32 %s272, 1
          %s2243 = scalar_lea.sflag [#allocation4], %s2242
          %s2244 = sand.u32 %s272, 1
          %s2245 = smul.addr %s2244, 2
          %s2246 = scalar_lea.vmem [#allocation3], %s2245
          %2247 = dma.done %s2243, 32
        $region76: #{tpu_custom_call.1} parent=71 // pred_fallthru
          _
      $region72: #{tpu_custom_call.1} parent=5 // pred_fallthru
        _
    $region6: #{tpu_custom_call.1} parent=1 // loop_footer
      %s26 = sadd.s32 1, %s22
    $region7: #{tpu_custom_call.1} parent=1 // loop_footer_branch
      %21 = sbr.rel target = $region3
    $region8: #{tpu_custom_call.1} parent=1 // loop_exit
      _
    %2248 = vsyncpa [#allocation4], 1
    %s2249 = scalar_lea.sflag [#allocation4], 1
    %2250 = vsyncpa %s2249, 1

</llo_original>
